<compile_context>
chip_gen: v7x
topology: tpu7x:2x2x1
jax: 0.10.0
libtpu: 0.0.40
codegen_flags: <defaults>
</compile_context>

<pallas_src>
import functools

import jax
import jax.numpy as jnp
from jax.experimental import pallas as pl
from jax.experimental.pallas import tpu as pltpu


def _round_up(x, m):
    return (x + m - 1) // m * m


def _block_diag(ws):
    """Stacked weights [N, a, b] -> block-diagonal matrix [N*a, N*b]."""
    n, a, b = ws.shape
    eye = jnp.eye(n, dtype=ws.dtype)
    return jnp.einsum("ij,ipq->ipjq", eye, ws).reshape(n * a, n * b)


def _mmoe_kernel(E, H, O, T,
                 x_ref, w1g_ref, b1g_ref, w2_ref, b2_ref,
                 grep_ref, tile_ref, seg_ref, segT_ref, sum_ref,
                 tw1_ref, tb1_ref, tw2_ref, tb2_ref, out_ref):
    EH, TE = E * H, T * E
    x = x_ref[...]                                                       # [TB, D]

    # ---- Fused expert-fc1 + gate-logits: ONE matmul over [D, E*H + T*E].
    hg = jnp.dot(x, w1g_ref[...], preferred_element_type=jnp.float32) + b1g_ref[...]
    h = jnp.maximum(hg[:, :EH], 0.0)                                     # [TB, E*H] f32
    logits = hg[:, EH:EH + TE]                                           # [TB, T*E] f32 (128-aligned slice)

    # ---- Expert fc2, block-diagonal across experts.
    ex = jnp.dot(h.astype(w2_ref.dtype), w2_ref[...],
                 preferred_element_type=jnp.float32) + b2_ref[...]       # [TB, E*O] f32

    # ---- Per-task softmax: one EUP exp pass; segment sums / expansions via
    #      exact 0/1 matmuls (MXU slack).  Per-task maxes kept for stability.
    m_all = jnp.concatenate(
        [jnp.max(logits[:, t * E:(t + 1) * E], axis=1, keepdims=True)
         for t in range(T)], axis=1)                                     # [TB, T]
    m_exp = jnp.dot(m_all, segT_ref[...], preferred_element_type=jnp.float32)   # [TB, T*E]
    p = jnp.exp(logits - m_exp)                                          # single EUP pass
    denom = jnp.dot(p, seg_ref[...], preferred_element_type=jnp.float32)        # [TB, T]
    inv = pl.reciprocal(denom, approx=True)                              # EUP slot (≈ free)
    gates = p * jnp.dot(inv, segT_ref[...], preferred_element_type=jnp.float32)  # [TB, T*E]

    # ---- Expert mixture: expand (MXU) -> one VPU multiply -> segment-sum (MXU).
    gexp = jnp.dot(gates, grep_ref[...], preferred_element_type=jnp.float32)    # [TB, T*E*O]
    ex_t = jnp.dot(ex, tile_ref[...], preferred_element_type=jnp.float32)       # [TB, T*E*O]
    mix_all = jnp.dot(gexp * ex_t, sum_ref[...],
                      preferred_element_type=jnp.float32)                # [TB, T*O] in registers

    # ---- Towers, block-diagonal across tasks, fused sigmoid, one store.
    th = jnp.dot(mix_all.astype(tw1_ref.dtype), tw1_ref[...],
                 preferred_element_type=jnp.float32) + tb1_ref[...]      # [TB, T*TH]
    th = jnp.maximum(th, 0.0)
    y = jnp.dot(th.astype(tw2_ref.dtype), tw2_ref[...],
                preferred_element_type=jnp.float32) + tb2_ref[...]       # [TB, T]
    out_ref[...] = jax.nn.sigmoid(y)


def mmoe_forward(x, params, *, block_b=1024, compute_dtype=jnp.bfloat16,
                 vmem_limit_bytes=32 * 1024 * 1024):
    """MMoE forward. Returns a lane-dense [B, tasks] array; column t equals the
    PyTorch module's t-th [B, 1] output (caller slices if it wants a list)."""
    ew1, eb1, ew2, eb2, gw, tw1, tb1, tw2, tb2 = params
    B, D = x.shape
    E, _, H = ew1.shape
    O = ew2.shape[2]
    T, _, TH = tw1.shape
    EH, TE, EO, TEO, TO, TTH = E * H, T * E, E * O, T * E * O, T * O, T * TH

    # ---- One-time weight fusion (plain JAX, outside the kernel).
    w1_all = jnp.transpose(ew1, (1, 0, 2)).reshape(D, EH)
    gw_all = jnp.transpose(gw, (1, 0, 2)).reshape(D, TE)
    w1g = jnp.concatenate([w1_all, gw_all], axis=1).astype(compute_dtype)   # [D, E*H + T*E]
    b1g = jnp.concatenate([eb1.reshape(1, EH),
                           jnp.zeros((1, TE), eb1.dtype)], axis=1).astype(jnp.float32)
    w2_bd = _block_diag(ew2).astype(compute_dtype)                      # [E*H, E*O]
    b2_all = eb2.reshape(1, EO).astype(jnp.float32)
    tw1_bd = _block_diag(tw1).astype(compute_dtype)                     # [T*O, T*TH]
    tb1_all = tb1.reshape(1, TTH).astype(jnp.float32)
    tw2_bd = _block_diag(tw2).astype(compute_dtype)                     # [T*TH, T]
    tb2_all = tb2.reshape(1, T).astype(jnp.float32)

    # ---- Constant 0/1 routing matrices (exact in f32; ride on MXU slack).
    f32 = jnp.float32
    seg = jnp.repeat(jnp.eye(T, dtype=f32), E, axis=0)                  # [T*E, T]      segment sum
    segT = seg.T                                                        # [T,   T*E]    expand back
    grep = jnp.kron(jnp.eye(TE, dtype=f32), jnp.ones((1, O), f32))      # [T*E, T*E*O]  gate expand
    tile_m = jnp.tile(jnp.eye(EO, dtype=f32), (1, T))                   # [E*O, T*E*O]  expert tile
    sum_m = jnp.kron(jnp.eye(T, dtype=f32),
                     jnp.tile(jnp.eye(O, dtype=f32), (E, 1)))           # [T*E*O, T*O]  mixture sum

    # ---- Batch tiling: tile multiple of 8; prefer >=2 grid steps (v7x megacore).
    tb = _round_up(min(block_b, B), 8)
    padded_b = _round_up(B, tb)
    if padded_b == tb and B > 8:
        tb = _round_up(-(-B // 2), 8)
        padded_b = _round_up(B, tb)
    xp = x.astype(compute_dtype)
    if padded_b != B:
        xp = jnp.pad(xp, ((0, padded_b - B), (0, 0)))
    grid = (padded_b // tb,)

    rep = lambda i: (0, 0)  # weights / routing matrices: single resident block
    kernel = functools.partial(_mmoe_kernel, E, H, O, T)

    out = pl.pallas_call(
        kernel,
        grid=grid,
        in_specs=[
            pl.BlockSpec((tb, D), lambda i: (i, 0)),                    # x batch tile
            pl.BlockSpec((D, EH + TE), rep),
            pl.BlockSpec((1, EH + TE), rep),
            pl.BlockSpec((EH, EO), rep),
            pl.BlockSpec((1, EO), rep),
            pl.BlockSpec((TE, TEO), rep),
            pl.BlockSpec((EO, TEO), rep),
            pl.BlockSpec((TE, T), rep),
            pl.BlockSpec((T, TE), rep),
            pl.BlockSpec((TEO, TO), rep),
            pl.BlockSpec((TO, TTH), rep),
            pl.BlockSpec((1, TTH), rep),
            pl.BlockSpec((TTH, T), rep),
            pl.BlockSpec((1, T), rep),
        ],
        out_specs=pl.BlockSpec((tb, T), lambda i: (i, 0)),              # [B, T] output tile
        out_shape=jax.ShapeDtypeStruct((padded_b, T), jnp.float32),
        compiler_params=pltpu.CompilerParams(
            dimension_semantics=("parallel",),      # megacore sharding (v7x: 2 TCs)
            vmem_limit_bytes=vmem_limit_bytes,      # 32 MiB v7x-safe; ~64 MiB fine on v5e/v6e
        ),
    )(xp, w1g, b1g, w2_bd, b2_all, grep, tile_m, seg, segT, sum_m,
      tw1_bd, tb1_all, tw2_bd, tb2_all)
    return out[:B]


def mmoe_reference(x, params):
    """Pure-JAX f32 reference mirroring the PyTorch forward (eval mode)."""
    ew1, eb1, ew2, eb2, gw, tw1, tb1, tw2, tb2 = params
    E = ew1.shape[0]
    T = gw.shape[0]
    experts = jnp.stack(
        [jnp.maximum(x @ ew1[e] + eb1[e], 0.0) @ ew2[e] + eb2[e] for e in range(E)],
        axis=0)                                                          # [E, B, O]
    outs = []
    for t in range(T):
        gate = jax.nn.softmax(x @ gw[t], axis=1)                         # [B, E]
        mix = jnp.sum(gate.T[:, :, None] * experts, axis=0)              # [B, O]
        th = jnp.maximum(mix @ tw1[t] + tb1[t], 0.0)
        outs.append(jax.nn.sigmoid(th @ tw2[t] + tb2[t]))                # [B, 1]
    return outs


def init_params(key, *, input_size, num_experts, experts_out, experts_hidden,
                towers_hidden, tasks):
    ks = jax.random.split(key, 9)

    def lin_init(k, fan_in, shape):
        bound = 1.0 / jnp.sqrt(jnp.float32(fan_in))
        return jax.random.uniform(k, shape, jnp.float32, -bound, bound)

    ew1 = lin_init(ks[0], input_size, (num_experts, input_size, experts_hidden))
    eb1 = lin_init(ks[1], input_size, (num_experts, experts_hidden))
    ew2 = lin_init(ks[2], experts_hidden, (num_experts, experts_hidden, experts_out))
    eb2 = lin_init(ks[3], experts_hidden, (num_experts, experts_out))
    gw = jax.random.normal(ks[4], (tasks, input_size, num_experts), jnp.float32)
    tw1 = lin_init(ks[5], experts_out, (tasks, experts_out, towers_hidden))
    tb1 = lin_init(ks[6], experts_out, (tasks, towers_hidden))
    tw2 = lin_init(ks[7], towers_hidden, (tasks, towers_hidden, 1))
    tb2 = lin_init(ks[8], towers_hidden, (tasks, 1))
    return (ew1, eb1, ew2, eb2, gw, tw1, tb1, tw2, tb2)


if __name__ == "__main__":
    B = 16
    INPUT_SIZE = 16
    NUM_EXPERTS = 4
    EXPERTS_OUT = 16
    EXPERTS_HIDDEN = 32   # E*H = 128 -> the fused gate-logit slice is lane-aligned
    TOWERS_HIDDEN = 16
    TASKS = 3

    key = jax.random.PRNGKey(0)
    kx, kp = jax.random.split(key)
    x = jax.random.normal(kx, (B, INPUT_SIZE), jnp.float32)
    params = init_params(kp, input_size=INPUT_SIZE, num_experts=NUM_EXPERTS,
                         experts_out=EXPERTS_OUT, experts_hidden=EXPERTS_HIDDEN,
                         towers_hidden=TOWERS_HIDDEN, tasks=TASKS)

    ref_mat = jnp.concatenate(mmoe_reference(x, params), axis=1)         # [B, T]

    # f32 matmul path, 2-step pipelined batch grid at this demo size.
    # Tolerance is loose-ish only because of pl.reciprocal(approx=True) in the softmax.
    out_f32 = jax.block_until_ready(
        mmoe_forward(x, params, block_b=8, compute_dtype=jnp.float32))
    assert out_f32.shape == (B, TASKS)
    err32 = float(jnp.max(jnp.abs(out_f32 - ref_mat)))
    assert err32 < 1e-2, f"f32 max err {err32}"

    # Default path: bf16 MXU inputs / f32 accumulate, block_b auto-split to a 2-step grid.
    out_bf16 = jax.block_until_ready(mmoe_forward(x, params))
    assert out_bf16.shape == (B, TASKS)
    err16 = float(jnp.max(jnp.abs(out_bf16 - ref_mat)))
    assert err16 < 1e-1, f"bf16 max err {err16}"

    print("KERNEL_OK")
</pallas_src>

<mosaic_0001>
module attributes {stable_mosaic.version = 11 : i64} {
  func.func @_mmoe_kernel(%arg0: i32, %arg1: memref<8x16xf32, #tpu.memory_space<vmem>>, %arg2: memref<16x140xf32, #tpu.memory_space<vmem>>, %arg3: memref<1x140xf32, #tpu.memory_space<vmem>>, %arg4: memref<128x64xf32, #tpu.memory_space<vmem>>, %arg5: memref<1x64xf32, #tpu.memory_space<vmem>>, %arg6: memref<12x192xf32, #tpu.memory_space<vmem>>, %arg7: memref<64x192xf32, #tpu.memory_space<vmem>>, %arg8: memref<12x3xf32, #tpu.memory_space<vmem>>, %arg9: memref<3x12xf32, #tpu.memory_space<vmem>>, %arg10: memref<192x48xf32, #tpu.memory_space<vmem>>, %arg11: memref<48x48xf32, #tpu.memory_space<vmem>>, %arg12: memref<1x48xf32, #tpu.memory_space<vmem>>, %arg13: memref<48x3xf32, #tpu.memory_space<vmem>>, %arg14: memref<1x3xf32, #tpu.memory_space<vmem>>, %arg15: memref<8x3xf32, #tpu.memory_space<vmem>>) attributes {dimension_semantics = [#tpu.dimension_semantics<parallel>], iteration_bounds = array<i64: 2>, scalar_prefetch = 0 : i64, scratch_operands = 0 : i64, tpu.core_type = #tpu.core_type<tc>, window_params = [{transform_indices = @transform_0, window_bounds = array<i64: 8, 16>}, {pipeline_mode = #tpu.pipeline_mode<synchronous>, transform_indices = @transform_1, window_bounds = array<i64: 16, 140>}, {pipeline_mode = #tpu.pipeline_mode<synchronous>, transform_indices = @transform_2, window_bounds = array<i64: 1, 140>}, {pipeline_mode = #tpu.pipeline_mode<synchronous>, transform_indices = @transform_3, window_bounds = array<i64: 128, 64>}, {pipeline_mode = #tpu.pipeline_mode<synchronous>, transform_indices = @transform_4, window_bounds = array<i64: 1, 64>}, {pipeline_mode = #tpu.pipeline_mode<synchronous>, transform_indices = @transform_5, window_bounds = array<i64: 12, 192>}, {pipeline_mode = #tpu.pipeline_mode<synchronous>, transform_indices = @transform_6, window_bounds = array<i64: 64, 192>}, {pipeline_mode = #tpu.pipeline_mode<synchronous>, transform_indices = @transform_7, window_bounds = array<i64: 12, 3>}, {pipeline_mode = #tpu.pipeline_mode<synchronous>, transform_indices = @transform_8, window_bounds = array<i64: 3, 12>}, {pipeline_mode = #tpu.pipeline_mode<synchronous>, transform_indices = @transform_9, window_bounds = array<i64: 192, 48>}, {pipeline_mode = #tpu.pipeline_mode<synchronous>, transform_indices = @transform_10, window_bounds = array<i64: 48, 48>}, {pipeline_mode = #tpu.pipeline_mode<synchronous>, transform_indices = @transform_11, window_bounds = array<i64: 1, 48>}, {pipeline_mode = #tpu.pipeline_mode<synchronous>, transform_indices = @transform_12, window_bounds = array<i64: 48, 3>}, {pipeline_mode = #tpu.pipeline_mode<synchronous>, transform_indices = @transform_13, window_bounds = array<i64: 1, 3>}, {transform_indices = @transform_14, window_bounds = array<i64: 8, 3>}]} {
    %c0 = arith.constant 0 : index
    %c0_0 = arith.constant 0 : index
    %0 = vector.load %arg1[%c0, %c0_0] : memref<8x16xf32, #tpu.memory_space<vmem>>, vector<8x16xf32>
    %c0_1 = arith.constant 0 : index
    %c0_2 = arith.constant 0 : index
    %1 = vector.load %arg2[%c0_1, %c0_2] : memref<16x140xf32, #tpu.memory_space<vmem>>, vector<16x140xf32>
    %cst = arith.constant dense<0.000000e+00> : vector<8x140xf32>
    %2 = tpu.matmul %0, %1, %cst {dimension_numbers = #tpu.dot_dimension_numbers<[1], [0], [0], [1], [0, 0, 1, 1], [], []>} : vector<8x16xf32>, vector<16x140xf32>, vector<8x140xf32> -> vector<8x140xf32>
    %c0_3 = arith.constant 0 : index
    %c0_4 = arith.constant 0 : index
    %3 = vector.load %arg3[%c0_3, %c0_4] : memref<1x140xf32, #tpu.memory_space<vmem>>, vector<1x140xf32>
    %4 = vector.broadcast %3 : vector<1x140xf32> to vector<8x140xf32>
    %5 = arith.addf %2, %4 : vector<8x140xf32>
    %6 = vector.extract_strided_slice %5 {offsets = [0, 0], sizes = [8, 128], strides = [1, 1]} : vector<8x140xf32> to vector<8x128xf32>
    %cst_5 = arith.constant 0.000000e+00 : f32
    %7 = vector.broadcast %cst_5 : f32 to vector<8x128xf32>
    %8 = arith.maximumf %6, %7 : vector<8x128xf32>
    %9 = vector.extract_strided_slice %5 {offsets = [0, 128], sizes = [8, 12], strides = [1, 1]} : vector<8x140xf32> to vector<8x12xf32>
    %c0_6 = arith.constant 0 : index
    %c0_7 = arith.constant 0 : index
    %10 = vector.load %arg4[%c0_6, %c0_7] : memref<128x64xf32, #tpu.memory_space<vmem>>, vector<128x64xf32>
    %cst_8 = arith.constant dense<0.000000e+00> : vector<8x64xf32>
    %11 = tpu.matmul %8, %10, %cst_8 {dimension_numbers = #tpu.dot_dimension_numbers<[1], [0], [0], [1], [0, 0, 1, 1], [], []>} : vector<8x128xf32>, vector<128x64xf32>, vector<8x64xf32> -> vector<8x64xf32>
    %c0_9 = arith.constant 0 : index
    %c0_10 = arith.constant 0 : index
    %12 = vector.load %arg5[%c0_9, %c0_10] : memref<1x64xf32, #tpu.memory_space<vmem>>, vector<1x64xf32>
    %13 = vector.broadcast %12 : vector<1x64xf32> to vector<8x64xf32>
    %14 = arith.addf %11, %13 : vector<8x64xf32>
    %15 = vector.extract_strided_slice %9 {offsets = [0, 0], sizes = [8, 4], strides = [1, 1]} : vector<8x12xf32> to vector<8x4xf32>
    %cst_11 = arith.constant dense<0xFF800000> : vector<8xf32>
    %16 = vector.multi_reduction <maximumf>, %15, %cst_11 [1] : vector<8x4xf32> to vector<8xf32>
    %17 = vector.shape_cast %16 : vector<8xf32> to vector<8x1xf32>
    %18 = vector.extract_strided_slice %9 {offsets = [0, 4], sizes = [8, 4], strides = [1, 1]} : vector<8x12xf32> to vector<8x4xf32>
    %cst_12 = arith.constant dense<0xFF800000> : vector<8xf32>
    %19 = vector.multi_reduction <maximumf>, %18, %cst_12 [1] : vector<8x4xf32> to vector<8xf32>
    %20 = vector.shape_cast %19 : vector<8xf32> to vector<8x1xf32>
    %21 = vector.extract_strided_slice %9 {offsets = [0, 8], sizes = [8, 4], strides = [1, 1]} : vector<8x12xf32> to vector<8x4xf32>
    %cst_13 = arith.constant dense<0xFF800000> : vector<8xf32>
    %22 = vector.multi_reduction <maximumf>, %21, %cst_13 [1] : vector<8x4xf32> to vector<8xf32>
    %23 = vector.shape_cast %22 : vector<8xf32> to vector<8x1xf32>
    %24 = tpu.concatenate %17, %20, %23 in 1 : vector<8x1xf32>, vector<8x1xf32>, vector<8x1xf32> -> vector<8x3xf32>
    %c0_14 = arith.constant 0 : index
    %c0_15 = arith.constant 0 : index
    %25 = vector.load %arg9[%c0_14, %c0_15] : memref<3x12xf32, #tpu.memory_space<vmem>>, vector<3x12xf32>
    %cst_16 = arith.constant dense<0.000000e+00> : vector<8x12xf32>
    %26 = tpu.matmul %24, %25, %cst_16 {dimension_numbers = #tpu.dot_dimension_numbers<[1], [0], [0], [1], [0, 0, 1, 1], [], []>} : vector<8x3xf32>, vector<3x12xf32>, vector<8x12xf32> -> vector<8x12xf32>
    %27 = arith.subf %9, %26 : vector<8x12xf32>
    %28 = math.exp %27 : vector<8x12xf32>
    %c0_17 = arith.constant 0 : index
    %c0_18 = arith.constant 0 : index
    %29 = vector.load %arg8[%c0_17, %c0_18] : memref<12x3xf32, #tpu.memory_space<vmem>>, vector<12x3xf32>
    %cst_19 = arith.constant dense<0.000000e+00> : vector<8x3xf32>
    %30 = tpu.matmul %28, %29, %cst_19 {dimension_numbers = #tpu.dot_dimension_numbers<[1], [0], [0], [1], [0, 0, 1, 1], [], []>} : vector<8x12xf32>, vector<12x3xf32>, vector<8x3xf32> -> vector<8x3xf32>
    %31 = tpu.reciprocal %30 {approx = true} : vector<8x3xf32> -> vector<8x3xf32>
    %c0_20 = arith.constant 0 : index
    %c0_21 = arith.constant 0 : index
    %32 = vector.load %arg9[%c0_20, %c0_21] : memref<3x12xf32, #tpu.memory_space<vmem>>, vector<3x12xf32>
    %cst_22 = arith.constant dense<0.000000e+00> : vector<8x12xf32>
    %33 = tpu.matmul %31, %32, %cst_22 {dimension_numbers = #tpu.dot_dimension_numbers<[1], [0], [0], [1], [0, 0, 1, 1], [], []>} : vector<8x3xf32>, vector<3x12xf32>, vector<8x12xf32> -> vector<8x12xf32>
    %34 = arith.mulf %28, %33 : vector<8x12xf32>
    %c0_23 = arith.constant 0 : index
    %c0_24 = arith.constant 0 : index
    %35 = vector.load %arg6[%c0_23, %c0_24] : memref<12x192xf32, #tpu.memory_space<vmem>>, vector<12x192xf32>
    %cst_25 = arith.constant dense<0.000000e+00> : vector<8x192xf32>
    %36 = tpu.matmul %34, %35, %cst_25 {dimension_numbers = #tpu.dot_dimension_numbers<[1], [0], [0], [1], [0, 0, 1, 1], [], []>} : vector<8x12xf32>, vector<12x192xf32>, vector<8x192xf32> -> vector<8x192xf32>
    %c0_26 = arith.constant 0 : index
    %c0_27 = arith.constant 0 : index
    %37 = vector.load %arg7[%c0_26, %c0_27] : memref<64x192xf32, #tpu.memory_space<vmem>>, vector<64x192xf32>
    %cst_28 = arith.constant dense<0.000000e+00> : vector<8x192xf32>
    %38 = tpu.matmul %14, %37, %cst_28 {dimension_numbers = #tpu.dot_dimension_numbers<[1], [0], [0], [1], [0, 0, 1, 1], [], []>} : vector<8x64xf32>, vector<64x192xf32>, vector<8x192xf32> -> vector<8x192xf32>
    %39 = arith.mulf %36, %38 : vector<8x192xf32>
    %c0_29 = arith.constant 0 : index
    %c0_30 = arith.constant 0 : index
    %40 = vector.load %arg10[%c0_29, %c0_30] : memref<192x48xf32, #tpu.memory_space<vmem>>, vector<192x48xf32>
    %cst_31 = arith.constant dense<0.000000e+00> : vector<8x48xf32>
    %41 = tpu.matmul %39, %40, %cst_31 {dimension_numbers = #tpu.dot_dimension_numbers<[1], [0], [0], [1], [0, 0, 1, 1], [], []>} : vector<8x192xf32>, vector<192x48xf32>, vector<8x48xf32> -> vector<8x48xf32>
    %c0_32 = arith.constant 0 : index
    %c0_33 = arith.constant 0 : index
    %42 = vector.load %arg11[%c0_32, %c0_33] : memref<48x48xf32, #tpu.memory_space<vmem>>, vector<48x48xf32>
    %cst_34 = arith.constant dense<0.000000e+00> : vector<8x48xf32>
    %43 = tpu.matmul %41, %42, %cst_34 {dimension_numbers = #tpu.dot_dimension_numbers<[1], [0], [0], [1], [0, 0, 1, 1], [], []>} : vector<8x48xf32>, vector<48x48xf32>, vector<8x48xf32> -> vector<8x48xf32>
    %c0_35 = arith.constant 0 : index
    %c0_36 = arith.constant 0 : index
    %44 = vector.load %arg12[%c0_35, %c0_36] : memref<1x48xf32, #tpu.memory_space<vmem>>, vector<1x48xf32>
    %45 = vector.broadcast %44 : vector<1x48xf32> to vector<8x48xf32>
    %46 = arith.addf %43, %45 : vector<8x48xf32>
    %cst_37 = arith.constant 0.000000e+00 : f32
    %47 = vector.broadcast %cst_37 : f32 to vector<8x48xf32>
    %48 = arith.maximumf %46, %47 : vector<8x48xf32>
    %c0_38 = arith.constant 0 : index
    %c0_39 = arith.constant 0 : index
    %49 = vector.load %arg13[%c0_38, %c0_39] : memref<48x3xf32, #tpu.memory_space<vmem>>, vector<48x3xf32>
    %cst_40 = arith.constant dense<0.000000e+00> : vector<8x3xf32>
    %50 = tpu.matmul %48, %49, %cst_40 {dimension_numbers = #tpu.dot_dimension_numbers<[1], [0], [0], [1], [0, 0, 1, 1], [], []>} : vector<8x48xf32>, vector<48x3xf32>, vector<8x3xf32> -> vector<8x3xf32>
    %c0_41 = arith.constant 0 : index
    %c0_42 = arith.constant 0 : index
    %51 = vector.load %arg14[%c0_41, %c0_42] : memref<1x3xf32, #tpu.memory_space<vmem>>, vector<1x3xf32>
    %52 = vector.broadcast %51 : vector<1x3xf32> to vector<8x3xf32>
    %53 = arith.addf %50, %52 : vector<8x3xf32>
    %54 = arith.negf %53 : vector<8x3xf32>
    %55 = math.exp %54 : vector<8x3xf32>
    %cst_43 = arith.constant 1.000000e+00 : f32
    %56 = vector.broadcast %cst_43 : f32 to vector<8x3xf32>
    %57 = arith.addf %56, %55 : vector<8x3xf32>
    %58 = arith.divf %56, %57 : vector<8x3xf32>
    %c0_44 = arith.constant 0 : index
    %c0_45 = arith.constant 0 : index
    %59 = vector.load %arg15[%c0_44, %c0_45] : memref<8x3xf32, #tpu.memory_space<vmem>>, vector<8x3xf32>
    tpu.vector_store %arg15[%c0_44, %c0_45], %58 {strides = array<i32>} : memref<8x3xf32, #tpu.memory_space<vmem>>, vector<8x3xf32>,
    return
  }
  func.func @transform_0(%arg0: i32) -> (i32, i32) {
    %c0_i32 = arith.constant 0 : i32
    %c0_i32_0 = arith.constant 0 : i32
    return %arg0, %c0_i32 : i32, i32
  }
  func.func @transform_1(%arg0: i32) -> (i32, i32) {
    %c0_i32 = arith.constant 0 : i32
    %c0_i32_0 = arith.constant 0 : i32
    %c0_i32_1 = arith.constant 0 : i32
    return %c0_i32, %c0_i32_0 : i32, i32
  }
  func.func @transform_2(%arg0: i32) -> (i32, i32) {
    %c0_i32 = arith.constant 0 : i32
    %c0_i32_0 = arith.constant 0 : i32
    %c0_i32_1 = arith.constant 0 : i32
    return %c0_i32, %c0_i32_0 : i32, i32
  }
  func.func @transform_3(%arg0: i32) -> (i32, i32) {
    %c0_i32 = arith.constant 0 : i32
    %c0_i32_0 = arith.constant 0 : i32
    %c0_i32_1 = arith.constant 0 : i32
    return %c0_i32, %c0_i32_0 : i32, i32
  }
  func.func @transform_4(%arg0: i32) -> (i32, i32) {
    %c0_i32 = arith.constant 0 : i32
    %c0_i32_0 = arith.constant 0 : i32
    %c0_i32_1 = arith.constant 0 : i32
    return %c0_i32, %c0_i32_0 : i32, i32
  }
  func.func @transform_5(%arg0: i32) -> (i32, i32) {
    %c0_i32 = arith.constant 0 : i32
    %c0_i32_0 = arith.constant 0 : i32
    %c0_i32_1 = arith.constant 0 : i32
    return %c0_i32, %c0_i32_0 : i32, i32
  }
  func.func @transform_6(%arg0: i32) -> (i32, i32) {
    %c0_i32 = arith.constant 0 : i32
    %c0_i32_0 = arith.constant 0 : i32
    %c0_i32_1 = arith.constant 0 : i32
    return %c0_i32, %c0_i32_0 : i32, i32
  }
  func.func @transform_7(%arg0: i32) -> (i32, i32) {
    %c0_i32 = arith.constant 0 : i32
    %c0_i32_0 = arith.constant 0 : i32
    %c0_i32_1 = arith.constant 0 : i32
    return %c0_i32, %c0_i32_0 : i32, i32
  }
  func.func @transform_8(%arg0: i32) -> (i32, i32) {
    %c0_i32 = arith.constant 0 : i32
    %c0_i32_0 = arith.constant 0 : i32
    %c0_i32_1 = arith.constant 0 : i32
    return %c0_i32, %c0_i32_0 : i32, i32
  }
  func.func @transform_9(%arg0: i32) -> (i32, i32) {
    %c0_i32 = arith.constant 0 : i32
    %c0_i32_0 = arith.constant 0 : i32
    %c0_i32_1 = arith.constant 0 : i32
    return %c0_i32, %c0_i32_0 : i32, i32
  }
  func.func @transform_10(%arg0: i32) -> (i32, i32) {
    %c0_i32 = arith.constant 0 : i32
    %c0_i32_0 = arith.constant 0 : i32
    %c0_i32_1 = arith.constant 0 : i32
    return %c0_i32, %c0_i32_0 : i32, i32
  }
  func.func @transform_11(%arg0: i32) -> (i32, i32) {
    %c0_i32 = arith.constant 0 : i32
    %c0_i32_0 = arith.constant 0 : i32
    %c0_i32_1 = arith.constant 0 : i32
    return %c0_i32, %c0_i32_0 : i32, i32
  }
  func.func @transform_12(%arg0: i32) -> (i32, i32) {
    %c0_i32 = arith.constant 0 : i32
    %c0_i32_0 = arith.constant 0 : i32
    %c0_i32_1 = arith.constant 0 : i32
    return %c0_i32, %c0_i32_0 : i32, i32
  }
  func.func @transform_13(%arg0: i32) -> (i32, i32) {
    %c0_i32 = arith.constant 0 : i32
    %c0_i32_0 = arith.constant 0 : i32
    %c0_i32_1 = arith.constant 0 : i32
    return %c0_i32, %c0_i32_0 : i32, i32
  }
  func.func @transform_14(%arg0: i32) -> (i32, i32) {
    %c0_i32 = arith.constant 0 : i32
    %c0_i32_0 = arith.constant 0 : i32
    return %arg0, %c0_i32 : i32, i32
  }
}

</mosaic_0001>

<llo_original>
// kernel: tpu_custom_call.1
$region0: #{tpu_custom_call.1}
  #allocation0 [shape = 'u32[]', space=smem, size = 0x4, offset = 0x4, fixed_abs, tag = 'smem constant byte address 0x4 - core index']
  #allocation1 [shape = 'u32[144,128]{1,0:T(1,128)}', space=vmem, size = 0x12000, scoped, tag = 'internal scratch']
  %s0 = inlined_call_operand.vmem [shape: f32[16,16], index: 0, kind: input, shape index: {}]
  %s1 = inlined_call_operand.vmem [shape: f32[16,140], index: 1, kind: input, shape index: {}]
  %s2 = inlined_call_operand.vmem [shape: f32[1,140], index: 2, kind: input, shape index: {}]
  %s3 = inlined_call_operand.vmem [shape: f32[128,64], index: 3, kind: input, shape index: {}]
  %s4 = inlined_call_operand.vmem [shape: f32[1,64], index: 4, kind: input, shape index: {}]
  %s5 = inlined_call_operand.vmem [shape: f32[12,192], index: 5, kind: input, shape index: {}]
  %s6 = inlined_call_operand.vmem [shape: f32[64,192], index: 6, kind: input, shape index: {}]
  %s7 = inlined_call_operand.vmem [shape: f32[12,3], index: 7, kind: input, shape index: {}]
  %s8 = inlined_call_operand.vmem [shape: f32[3,12], index: 8, kind: input, shape index: {}]
  %s9 = inlined_call_operand.vmem [shape: f32[192,48], index: 9, kind: input, shape index: {}]
  %s10 = inlined_call_operand.vmem [shape: f32[48,48], index: 10, kind: input, shape index: {}]
  %s11 = inlined_call_operand.vmem [shape: f32[1,48], index: 11, kind: input, shape index: {}]
  %s12 = inlined_call_operand.vmem [shape: f32[48,3], index: 12, kind: input, shape index: {}]
  %s13 = inlined_call_operand.vmem [shape: f32[1,3], index: 13, kind: input, shape index: {}]
  %s14 = inlined_call_operand.vmem [shape: f32[16,3], index: 14, kind: output, shape index: {}]
  %s15 = sld [smem:[#allocation0]]
  $region89: #{tpu_custom_call.1} parent=0
    _
  %s17 = ssub.s32 1, %s15
  %s18 = scalar_select 0, %s17, %s15
  loop: start=0, step=1, limit=4
  $region2: #{tpu_custom_call.1} parent=0 // loop_pre_header
    _
  $region3: #{tpu_custom_call.1} parent=0 // loop_header
    %s20 = sphi 0, %s24
    %p21 = scmp.ge.s32.totalorder %s20, 4
    %s30 = sphi 0, %s32
    %s33 = sphi 0, %s30
    %s34 = sphi 0, %s33
    %s50 = sphi 0, %s34
    %s54 = sphi 0, %s54
    %s56 = sphi 0, %s54
    %s57 = sphi 0, %s56
    %s71 = sphi 0, %s57
    %s75 = sphi 0, %s75
    %s77 = sphi 0, %s75
    %s78 = sphi 0, %s77
    %s92 = sphi 0, %s78
    %s96 = sphi 0, %s96
    %s98 = sphi 0, %s96
    %s99 = sphi 0, %s98
    %s113 = sphi 0, %s99
    %s117 = sphi 0, %s117
    %s119 = sphi 0, %s117
    %s120 = sphi 0, %s119
    %s134 = sphi 0, %s120
    %s138 = sphi 0, %s138
    %s140 = sphi 0, %s138
    %s141 = sphi 0, %s140
    %s155 = sphi 0, %s141
    %s159 = sphi 0, %s159
    %s161 = sphi 0, %s159
    %s162 = sphi 0, %s161
    %s176 = sphi 0, %s162
    %s180 = sphi 0, %s180
    %s182 = sphi 0, %s180
    %s183 = sphi 0, %s182
    %s197 = sphi 0, %s183
    %s201 = sphi 0, %s201
    %s203 = sphi 0, %s201
    %s204 = sphi 0, %s203
    %s218 = sphi 0, %s204
    %s222 = sphi 0, %s222
    %s224 = sphi 0, %s222
    %s225 = sphi 0, %s224
    %s239 = sphi 0, %s225
    %s243 = sphi 0, %s243
    %s245 = sphi 0, %s243
    %s246 = sphi 0, %s245
    %s260 = sphi 0, %s246
    %s264 = sphi 0, %s264
    %s266 = sphi 0, %s264
    %s267 = sphi 0, %s266
    %s281 = sphi 0, %s267
    %s285 = sphi 0, %s285
    %s287 = sphi 0, %s285
    %s288 = sphi 0, %s287
    %s302 = sphi 0, %s288
    %s306 = sphi 0, %s306
    %s308 = sphi 0, %s306
    %s309 = sphi 0, %s308
    %s323 = sphi 0, %s309
    %s329 = sphi 0, %s331
    %s332 = sphi 0, %s329
    %s333 = sphi 0, %s332
    %s349 = sphi 0, %s333
  $region4: #{tpu_custom_call.1} parent=0 // loop_header_branch
    %23 = sbr.rel (%p21) target = $region8
  $region5: #{tpu_custom_call.1} parent=0 // loop_body
    %s25 = ssub.s32 %s20, 1
    %s26 = ssub.s32 %s20, 2
    %s27 = sadd.s32 %s20, 1
    %s28 = ssub.s32 %s20, %s27
    %p29 = scmp.eq.s32.totalorder %s28, 0
    %s31 = sadd.s32 %s30, 1
    %s32 = scalar_select %p29, %s30, %s31
    %p35 = pneg %p29
    %p36 = scmp.eq.s32.totalorder %s20, 1
    %p37 = por %p35, %p36
    %p38 = scmp.ne.s32.totalorder %s30, %s33
    %p39 = scmp.eq.s32.totalorder %s20, 0
    %p40 = por %p38, %p39
    %p41 = scmp.ne.s32.totalorder %s30, %s33
    %p42 = scmp.eq.s32.totalorder %s25, 1
    %p43 = por %p41, %p42
    %p44 = scmp.ne.s32.totalorder %s33, %s34
    %p45 = scmp.eq.s32.totalorder %s25, 0
    %p46 = por %p44, %p45
    %p47 = scmp.ne.s32.totalorder %s33, %s34
    %p48 = scmp.eq.s32.totalorder %s26, 1
    %p49 = por %p47, %p48
    %p51 = scmp.ne.s32.totalorder %s34, %s50
    %p52 = scmp.eq.s32.totalorder %s26, 0
    %p53 = por %p51, %p52
    %s55 = sadd.s32 %s54, 1
    %p58 = scmp.eq.s32.totalorder %s20, 1
    %p59 = scmp.ne.s32.totalorder %s54, %s56
    %p60 = scmp.eq.s32.totalorder %s20, 0
    %p61 = por %p59, %p60
    %p62 = scmp.ne.s32.totalorder %s54, %s56
    %p63 = scmp.eq.s32.totalorder %s25, 1
    %p64 = por %p62, %p63
    %p65 = scmp.ne.s32.totalorder %s56, %s57
    %p66 = scmp.eq.s32.totalorder %s25, 0
    %p67 = por %p65, %p66
    %p68 = scmp.ne.s32.totalorder %s56, %s57
    %p69 = scmp.eq.s32.totalorder %s26, 1
    %p70 = por %p68, %p69
    %p72 = scmp.ne.s32.totalorder %s57, %s71
    %p73 = scmp.eq.s32.totalorder %s26, 0
    %p74 = por %p72, %p73
    %s76 = sadd.s32 %s75, 1
    %p79 = scmp.eq.s32.totalorder %s20, 1
    %p80 = scmp.ne.s32.totalorder %s75, %s77
    %p81 = scmp.eq.s32.totalorder %s20, 0
    %p82 = por %p80, %p81
    %p83 = scmp.ne.s32.totalorder %s75, %s77
    %p84 = scmp.eq.s32.totalorder %s25, 1
    %p85 = por %p83, %p84
    %p86 = scmp.ne.s32.totalorder %s77, %s78
    %p87 = scmp.eq.s32.totalorder %s25, 0
    %p88 = por %p86, %p87
    %p89 = scmp.ne.s32.totalorder %s77, %s78
    %p90 = scmp.eq.s32.totalorder %s26, 1
    %p91 = por %p89, %p90
    %p93 = scmp.ne.s32.totalorder %s78, %s92
    %p94 = scmp.eq.s32.totalorder %s26, 0
    %p95 = por %p93, %p94
    %s97 = sadd.s32 %s96, 1
    %p100 = scmp.eq.s32.totalorder %s20, 1
    %p101 = scmp.ne.s32.totalorder %s96, %s98
    %p102 = scmp.eq.s32.totalorder %s20, 0
    %p103 = por %p101, %p102
    %p104 = scmp.ne.s32.totalorder %s96, %s98
    %p105 = scmp.eq.s32.totalorder %s25, 1
    %p106 = por %p104, %p105
    %p107 = scmp.ne.s32.totalorder %s98, %s99
    %p108 = scmp.eq.s32.totalorder %s25, 0
    %p109 = por %p107, %p108
    %p110 = scmp.ne.s32.totalorder %s98, %s99
    %p111 = scmp.eq.s32.totalorder %s26, 1
    %p112 = por %p110, %p111
    %p114 = scmp.ne.s32.totalorder %s99, %s113
    %p115 = scmp.eq.s32.totalorder %s26, 0
    %p116 = por %p114, %p115
    %s118 = sadd.s32 %s117, 1
    %p121 = scmp.eq.s32.totalorder %s20, 1
    %p122 = scmp.ne.s32.totalorder %s117, %s119
    %p123 = scmp.eq.s32.totalorder %s20, 0
    %p124 = por %p122, %p123
    %p125 = scmp.ne.s32.totalorder %s117, %s119
    %p126 = scmp.eq.s32.totalorder %s25, 1
    %p127 = por %p125, %p126
    %p128 = scmp.ne.s32.totalorder %s119, %s120
    %p129 = scmp.eq.s32.totalorder %s25, 0
    %p130 = por %p128, %p129
    %p131 = scmp.ne.s32.totalorder %s119, %s120
    %p132 = scmp.eq.s32.totalorder %s26, 1
    %p133 = por %p131, %p132
    %p135 = scmp.ne.s32.totalorder %s120, %s134
    %p136 = scmp.eq.s32.totalorder %s26, 0
    %p137 = por %p135, %p136
    %s139 = sadd.s32 %s138, 1
    %p142 = scmp.eq.s32.totalorder %s20, 1
    %p143 = scmp.ne.s32.totalorder %s138, %s140
    %p144 = scmp.eq.s32.totalorder %s20, 0
    %p145 = por %p143, %p144
    %p146 = scmp.ne.s32.totalorder %s138, %s140
    %p147 = scmp.eq.s32.totalorder %s25, 1
    %p148 = por %p146, %p147
    %p149 = scmp.ne.s32.totalorder %s140, %s141
    %p150 = scmp.eq.s32.totalorder %s25, 0
    %p151 = por %p149, %p150
    %p152 = scmp.ne.s32.totalorder %s140, %s141
    %p153 = scmp.eq.s32.totalorder %s26, 1
    %p154 = por %p152, %p153
    %p156 = scmp.ne.s32.totalorder %s141, %s155
    %p157 = scmp.eq.s32.totalorder %s26, 0
    %p158 = por %p156, %p157
    %s160 = sadd.s32 %s159, 1
    %p163 = scmp.eq.s32.totalorder %s20, 1
    %p164 = scmp.ne.s32.totalorder %s159, %s161
    %p165 = scmp.eq.s32.totalorder %s20, 0
    %p166 = por %p164, %p165
    %p167 = scmp.ne.s32.totalorder %s159, %s161
    %p168 = scmp.eq.s32.totalorder %s25, 1
    %p169 = por %p167, %p168
    %p170 = scmp.ne.s32.totalorder %s161, %s162
    %p171 = scmp.eq.s32.totalorder %s25, 0
    %p172 = por %p170, %p171
    %p173 = scmp.ne.s32.totalorder %s161, %s162
    %p174 = scmp.eq.s32.totalorder %s26, 1
    %p175 = por %p173, %p174
    %p177 = scmp.ne.s32.totalorder %s162, %s176
    %p178 = scmp.eq.s32.totalorder %s26, 0
    %p179 = por %p177, %p178
    %s181 = sadd.s32 %s180, 1
    %p184 = scmp.eq.s32.totalorder %s20, 1
    %p185 = scmp.ne.s32.totalorder %s180, %s182
    %p186 = scmp.eq.s32.totalorder %s20, 0
    %p187 = por %p185, %p186
    %p188 = scmp.ne.s32.totalorder %s180, %s182
    %p189 = scmp.eq.s32.totalorder %s25, 1
    %p190 = por %p188, %p189
    %p191 = scmp.ne.s32.totalorder %s182, %s183
    %p192 = scmp.eq.s32.totalorder %s25, 0
    %p193 = por %p191, %p192
    %p194 = scmp.ne.s32.totalorder %s182, %s183
    %p195 = scmp.eq.s32.totalorder %s26, 1
    %p196 = por %p194, %p195
    %p198 = scmp.ne.s32.totalorder %s183, %s197
    %p199 = scmp.eq.s32.totalorder %s26, 0
    %p200 = por %p198, %p199
    %s202 = sadd.s32 %s201, 1
    %p205 = scmp.eq.s32.totalorder %s20, 1
    %p206 = scmp.ne.s32.totalorder %s201, %s203
    %p207 = scmp.eq.s32.totalorder %s20, 0
    %p208 = por %p206, %p207
    %p209 = scmp.ne.s32.totalorder %s201, %s203
    %p210 = scmp.eq.s32.totalorder %s25, 1
    %p211 = por %p209, %p210
    %p212 = scmp.ne.s32.totalorder %s203, %s204
    %p213 = scmp.eq.s32.totalorder %s25, 0
    %p214 = por %p212, %p213
    %p215 = scmp.ne.s32.totalorder %s203, %s204
    %p216 = scmp.eq.s32.totalorder %s26, 1
    %p217 = por %p215, %p216
    %p219 = scmp.ne.s32.totalorder %s204, %s218
    %p220 = scmp.eq.s32.totalorder %s26, 0
    %p221 = por %p219, %p220
    %s223 = sadd.s32 %s222, 1
    %p226 = scmp.eq.s32.totalorder %s20, 1
    %p227 = scmp.ne.s32.totalorder %s222, %s224
    %p228 = scmp.eq.s32.totalorder %s20, 0
    %p229 = por %p227, %p228
    %p230 = scmp.ne.s32.totalorder %s222, %s224
    %p231 = scmp.eq.s32.totalorder %s25, 1
    %p232 = por %p230, %p231
    %p233 = scmp.ne.s32.totalorder %s224, %s225
    %p234 = scmp.eq.s32.totalorder %s25, 0
    %p235 = por %p233, %p234
    %p236 = scmp.ne.s32.totalorder %s224, %s225
    %p237 = scmp.eq.s32.totalorder %s26, 1
    %p238 = por %p236, %p237
    %p240 = scmp.ne.s32.totalorder %s225, %s239
    %p241 = scmp.eq.s32.totalorder %s26, 0
    %p242 = por %p240, %p241
    %s244 = sadd.s32 %s243, 1
    %p247 = scmp.eq.s32.totalorder %s20, 1
    %p248 = scmp.ne.s32.totalorder %s243, %s245
    %p249 = scmp.eq.s32.totalorder %s20, 0
    %p250 = por %p248, %p249
    %p251 = scmp.ne.s32.totalorder %s243, %s245
    %p252 = scmp.eq.s32.totalorder %s25, 1
    %p253 = por %p251, %p252
    %p254 = scmp.ne.s32.totalorder %s245, %s246
    %p255 = scmp.eq.s32.totalorder %s25, 0
    %p256 = por %p254, %p255
    %p257 = scmp.ne.s32.totalorder %s245, %s246
    %p258 = scmp.eq.s32.totalorder %s26, 1
    %p259 = por %p257, %p258
    %p261 = scmp.ne.s32.totalorder %s246, %s260
    %p262 = scmp.eq.s32.totalorder %s26, 0
    %p263 = por %p261, %p262
    %s265 = sadd.s32 %s264, 1
    %p268 = scmp.eq.s32.totalorder %s20, 1
    %p269 = scmp.ne.s32.totalorder %s264, %s266
    %p270 = scmp.eq.s32.totalorder %s20, 0
    %p271 = por %p269, %p270
    %p272 = scmp.ne.s32.totalorder %s264, %s266
    %p273 = scmp.eq.s32.totalorder %s25, 1
    %p274 = por %p272, %p273
    %p275 = scmp.ne.s32.totalorder %s266, %s267
    %p276 = scmp.eq.s32.totalorder %s25, 0
    %p277 = por %p275, %p276
    %p278 = scmp.ne.s32.totalorder %s266, %s267
    %p279 = scmp.eq.s32.totalorder %s26, 1
    %p280 = por %p278, %p279
    %p282 = scmp.ne.s32.totalorder %s267, %s281
    %p283 = scmp.eq.s32.totalorder %s26, 0
    %p284 = por %p282, %p283
    %s286 = sadd.s32 %s285, 1
    %p289 = scmp.eq.s32.totalorder %s20, 1
    %p290 = scmp.ne.s32.totalorder %s285, %s287
    %p291 = scmp.eq.s32.totalorder %s20, 0
    %p292 = por %p290, %p291
    %p293 = scmp.ne.s32.totalorder %s285, %s287
    %p294 = scmp.eq.s32.totalorder %s25, 1
    %p295 = por %p293, %p294
    %p296 = scmp.ne.s32.totalorder %s287, %s288
    %p297 = scmp.eq.s32.totalorder %s25, 0
    %p298 = por %p296, %p297
    %p299 = scmp.ne.s32.totalorder %s287, %s288
    %p300 = scmp.eq.s32.totalorder %s26, 1
    %p301 = por %p299, %p300
    %p303 = scmp.ne.s32.totalorder %s288, %s302
    %p304 = scmp.eq.s32.totalorder %s26, 0
    %p305 = por %p303, %p304
    %s307 = sadd.s32 %s306, 1
    %p310 = scmp.eq.s32.totalorder %s20, 1
    %p311 = scmp.ne.s32.totalorder %s306, %s308
    %p312 = scmp.eq.s32.totalorder %s20, 0
    %p313 = por %p311, %p312
    %p314 = scmp.ne.s32.totalorder %s306, %s308
    %p315 = scmp.eq.s32.totalorder %s25, 1
    %p316 = por %p314, %p315
    %p317 = scmp.ne.s32.totalorder %s308, %s309
    %p318 = scmp.eq.s32.totalorder %s25, 0
    %p319 = por %p317, %p318
    %p320 = scmp.ne.s32.totalorder %s308, %s309
    %p321 = scmp.eq.s32.totalorder %s26, 1
    %p322 = por %p320, %p321
    %p324 = scmp.ne.s32.totalorder %s309, %s323
    %p325 = scmp.eq.s32.totalorder %s26, 0
    %p326 = por %p324, %p325
    %s327 = ssub.s32 %s20, %s27
    %p328 = scmp.eq.s32.totalorder %s327, 0
    %s330 = sadd.s32 %s329, 1
    %s331 = scalar_select %p328, %s329, %s330
    %p334 = pneg %p328
    %p335 = scmp.eq.s32.totalorder %s20, 1
    %p336 = por %p334, %p335
    %p337 = scmp.ne.s32.totalorder %s329, %s332
    %p338 = scmp.eq.s32.totalorder %s20, 0
    %p339 = por %p337, %p338
    %p340 = scmp.ne.s32.totalorder %s329, %s332
    %p341 = scmp.eq.s32.totalorder %s25, 1
    %p342 = por %p340, %p341
    %p343 = scmp.ne.s32.totalorder %s332, %s333
    %p344 = scmp.eq.s32.totalorder %s25, 0
    %p345 = por %p343, %p344
    %p346 = scmp.ne.s32.totalorder %s332, %s333
    %p347 = scmp.eq.s32.totalorder %s26, 1
    %p348 = por %p346, %p347
    %p350 = scmp.ne.s32.totalorder %s333, %s349
    %p351 = scmp.eq.s32.totalorder %s26, 0
    %p352 = por %p350, %p351
    %p353 = scmp.le.s32.totalorder 1, %s20
    %p354 = scmp.lt.s32.totalorder %s20, 3
    %p355 = pnand %p353, %p354
    %p356 = pneg %p355
    // Predicated region
    $region9: #{tpu_custom_call.1} parent=5 // pred_check
      _
    $region10: #{tpu_custom_call.1} parent=5 // pred_check_branch
      %358 = sbr.rel (%p355) target = $region12
    $region11: #{tpu_custom_call.1} parent=5 // pred_region
      %s359 = ssub.s32 %s20, 1
      // Predicated region
      $region13: #{tpu_custom_call.1} parent=11 // pred_check
        %p360 = pneg %p67
      $region14: #{tpu_custom_call.1} parent=11 // pred_check_branch
        %362 = sbr.rel (%p360) target = $region16
      $region15: #{tpu_custom_call.1} parent=11 // pred_region
        _
      $region16: #{tpu_custom_call.1} parent=11 // pred_fallthru
        _
      // Predicated region
      $region17: #{tpu_custom_call.1} parent=11 // pred_check
        %p363 = pneg %p88
      $region18: #{tpu_custom_call.1} parent=11 // pred_check_branch
        %365 = sbr.rel (%p363) target = $region20
      $region19: #{tpu_custom_call.1} parent=11 // pred_region
        _
      $region20: #{tpu_custom_call.1} parent=11 // pred_fallthru
        _
      // Predicated region
      $region21: #{tpu_custom_call.1} parent=11 // pred_check
        %p366 = pneg %p109
      $region22: #{tpu_custom_call.1} parent=11 // pred_check_branch
        %368 = sbr.rel (%p366) target = $region24
      $region23: #{tpu_custom_call.1} parent=11 // pred_region
        _
      $region24: #{tpu_custom_call.1} parent=11 // pred_fallthru
        _
      // Predicated region
      $region25: #{tpu_custom_call.1} parent=11 // pred_check
        %p369 = pneg %p130
      $region26: #{tpu_custom_call.1} parent=11 // pred_check_branch
        %371 = sbr.rel (%p369) target = $region28
      $region27: #{tpu_custom_call.1} parent=11 // pred_region
        _
      $region28: #{tpu_custom_call.1} parent=11 // pred_fallthru
        _
      // Predicated region
      $region29: #{tpu_custom_call.1} parent=11 // pred_check
        %p372 = pneg %p151
      $region30: #{tpu_custom_call.1} parent=11 // pred_check_branch
        %374 = sbr.rel (%p372) target = $region32
      $region31: #{tpu_custom_call.1} parent=11 // pred_region
        _
      $region32: #{tpu_custom_call.1} parent=11 // pred_fallthru
        _
      // Predicated region
      $region33: #{tpu_custom_call.1} parent=11 // pred_check
        %p375 = pneg %p172
      $region34: #{tpu_custom_call.1} parent=11 // pred_check_branch
        %377 = sbr.rel (%p375) target = $region36
      $region35: #{tpu_custom_call.1} parent=11 // pred_region
        _
      $region36: #{tpu_custom_call.1} parent=11 // pred_fallthru
        _
      // Predicated region
      $region37: #{tpu_custom_call.1} parent=11 // pred_check
        %p378 = pneg %p193
      $region38: #{tpu_custom_call.1} parent=11 // pred_check_branch
        %380 = sbr.rel (%p378) target = $region40
      $region39: #{tpu_custom_call.1} parent=11 // pred_region
        _
      $region40: #{tpu_custom_call.1} parent=11 // pred_fallthru
        _
      // Predicated region
      $region41: #{tpu_custom_call.1} parent=11 // pred_check
        %p381 = pneg %p214
      $region42: #{tpu_custom_call.1} parent=11 // pred_check_branch
        %383 = sbr.rel (%p381) target = $region44
      $region43: #{tpu_custom_call.1} parent=11 // pred_region
        _
      $region44: #{tpu_custom_call.1} parent=11 // pred_fallthru
        _
      // Predicated region
      $region45: #{tpu_custom_call.1} parent=11 // pred_check
        %p384 = pneg %p235
      $region46: #{tpu_custom_call.1} parent=11 // pred_check_branch
        %386 = sbr.rel (%p384) target = $region48
      $region47: #{tpu_custom_call.1} parent=11 // pred_region
        _
      $region48: #{tpu_custom_call.1} parent=11 // pred_fallthru
        _
      // Predicated region
      $region49: #{tpu_custom_call.1} parent=11 // pred_check
        %p387 = pneg %p256
      $region50: #{tpu_custom_call.1} parent=11 // pred_check_branch
        %389 = sbr.rel (%p387) target = $region52
      $region51: #{tpu_custom_call.1} parent=11 // pred_region
        _
      $region52: #{tpu_custom_call.1} parent=11 // pred_fallthru
        _
      // Predicated region
      $region53: #{tpu_custom_call.1} parent=11 // pred_check
        %p390 = pneg %p277
      $region54: #{tpu_custom_call.1} parent=11 // pred_check_branch
        %392 = sbr.rel (%p390) target = $region56
      $region55: #{tpu_custom_call.1} parent=11 // pred_region
        _
      $region56: #{tpu_custom_call.1} parent=11 // pred_fallthru
        _
      // Predicated region
      $region57: #{tpu_custom_call.1} parent=11 // pred_check
        %p393 = pneg %p298
      $region58: #{tpu_custom_call.1} parent=11 // pred_check_branch
        %395 = sbr.rel (%p393) target = $region60
      $region59: #{tpu_custom_call.1} parent=11 // pred_region
        _
      $region60: #{tpu_custom_call.1} parent=11 // pred_fallthru
        _
      // Predicated region
      $region61: #{tpu_custom_call.1} parent=11 // pred_check
        %p396 = pneg %p319
      $region62: #{tpu_custom_call.1} parent=11 // pred_check_branch
        %398 = sbr.rel (%p396) target = $region64
      $region63: #{tpu_custom_call.1} parent=11 // pred_region
        _
      $region64: #{tpu_custom_call.1} parent=11 // pred_fallthru
        _
    $region12: #{tpu_custom_call.1} parent=5 // pred_fallthru
      _
    %p399 = scmp.lt.s32.totalorder %s20, 2
    // Predicated region
    $region65: #{tpu_custom_call.1} parent=5 // pred_check
      %p400 = pneg %p399
    $region66: #{tpu_custom_call.1} parent=5 // pred_check_branch
      %402 = sbr.rel (%p400) target = $region68
    $region67: #{tpu_custom_call.1} parent=5 // pred_region
      // Predicated region
      $region69: #{tpu_custom_call.1} parent=67 // pred_check
        %p403 = pneg %p40
      $region70: #{tpu_custom_call.1} parent=67 // pred_check_branch
        %405 = sbr.rel (%p403) target = $region72
      $region71: #{tpu_custom_call.1} parent=67 // pred_region
        %p406 = scmp.lt.s32.totalorder %s20, 1
        %s407 = scalar_select %p406, %s20, 1
        %s408 = smul.addr %s407, 8
        %s409 = scalar_lea.vmem %s0, %s408
      $region72: #{tpu_custom_call.1} parent=67 // pred_fallthru
        _
    $region68: #{tpu_custom_call.1} parent=5 // pred_fallthru
      _
    %p410 = scmp.le.s32.totalorder 1, %s20
    %p411 = scmp.lt.s32.totalorder %s20, 3
    %p412 = pnand %p410, %p411
    %p413 = pneg %p412
    // Predicated region
    $region73: #{tpu_custom_call.1} parent=5 // pred_check
      _
    $region74: #{tpu_custom_call.1} parent=5 // pred_check_branch
      %415 = sbr.rel (%p412) target = $region76
    $region75: #{tpu_custom_call.1} parent=5 // pred_region
      %s416 = ssub.s32 %s20, 1
      %p417 = scmp.lt.s32.totalorder %s25, 1
      %s418 = scalar_select %p417, %s25, 1
      %s419 = smul.addr %s418, 8
      %s420 = scalar_lea.vmem %s0, %s419
      %p421 = pneg %p46
      %p422 = pneg %p43
      %p423 = pneg %p67
      %p424 = pneg %p64
      %p425 = pneg %p88
      %p426 = pneg %p85
      %p427 = pneg %p109
      %p428 = pneg %p106
      %p429 = pneg %p130
      %p430 = pneg %p127
      %p431 = pneg %p151
      %p432 = pneg %p148
      %p433 = pneg %p172
      %p434 = pneg %p169
      %p435 = pneg %p193
      %p436 = pneg %p190
      %p437 = pneg %p214
      %p438 = pneg %p211
      %p439 = pneg %p235
      %p440 = pneg %p232
      %p441 = pneg %p256
      %p442 = pneg %p253
      %p443 = pneg %p277
      %p444 = pneg %p274
      %p445 = pneg %p298
      %p446 = pneg %p295
      %p447 = pneg %p319
      %p448 = pneg %p316
      %p449 = pneg %p345
      %p450 = pneg %p342
      %p451 = scmp.lt.s32.totalorder %s25, 1
      %s452 = scalar_select %p451, %s25, 1
      %s453 = smul.addr %s452, 8
      %s454 = scalar_lea.vmem %s14, %s453
      %p455 = scmp.lt.s32.totalorder %s25, 1
      %s456 = scalar_select %p455, %s25, 1
      %s457 = smul.addr %s456, 8
      %s458 = scalar_lea.vmem %s0, %s457
      %p459 = scmp.lt.s32.totalorder %s25, 1
      %s460 = scalar_select %p459, %s25, 1
      %s461 = smul.addr %s460, 8
      %s462 = scalar_lea.vmem %s14, %s461
      %v463 = vld [vmem:[%s458] sm:$0xff]
      %v464 = vld [vmem:[%s1] sm:$0xff]
      %v465 = vld [vmem:[%s1 + $0x8] sm:$0xff]
      %v466 = vld [vmem:[%s1 + $0x10] sm:$0xff]
      %v467 = vld [vmem:[%s1 + $0x18] sm:$0xff]
      %v468 = vld [vmem:[%s2] sm:$0x3]
      %v470 = vlaneseq
      %v471 = vshrl.u32 %v470, 7
      %v472 = vsub.s32 0, %v471
      %v473 = vrot.slane %v468, %v472
      %v474 = vlaneseq
      %v475 = vshrl.u32 %v474, 7
      %v476 = vsub.s32 1, %v475
      %v477 = vrot.slane %v468, %v476
      %vm480 = vcmask 130048
      %v482 = vsel %vm480, %v463, 0
      %484 = vmatprep.subr.mxu0 %v465
      %485 = vmatpush1.msra.mxu0 %v464
      %486 = vmatprep.subr.mxu0 %v467
      %487 = vmatpush1.msra.mxu0 %v466
      %488 = vmatprep.subr.mxu0 0.0
      %489 = vmatpush1.msra.mxu0 0.0
      %490 = vmatprep.subr.mxu0 0.0
      %491 = vmatpush1.msra.mxu0 0.0
      %492 = vmatprep.subr.mxu0 0.0
      %493 = vmatpush1.msra.mxu0 0.0
      %494 = vmatprep.subr.mxu0 0.0
      %495 = vmatpush1.msra.mxu0 0.0
      %496 = vmatprep.subr.mxu0 0.0
      %497 = vmatpush1.msra.mxu0 0.0
      %498 = vmatprep.subr.mxu0 0.0
      %499 = vmatpush1.msra.mxu0 0.0
      %500 = vmatprep.subr.mxu0 0.0
      %501 = vmatpush1.msra.mxu0 0.0
      %502 = vmatprep.subr.mxu0 0.0
      %503 = vmatpush1.msra.mxu0 0.0
      %504 = vmatprep.subr.mxu0 0.0
      %505 = vmatpush1.msra.mxu0 0.0
      %506 = vmatprep.subr.mxu0 0.0
      %507 = vmatpush1.msra.mxu0 0.0
      %508 = vmatprep.subr.mxu0 0.0
      %509 = vmatpush1.msra.mxu0 0.0
      %510 = vmatprep.subr.mxu0 0.0
      %511 = vmatpush1.msra.mxu0 0.0
      %512 = vmatprep.subr.mxu0 0.0
      %513 = vmatpush1.msra.mxu0 0.0
      %514 = vmatprep.subr.mxu0 0.0
      %515 = vmatpush1.msra.mxu0 0.0
      %516 = vmatprep.subr.mxu0 0.0
      %517 = vmatpush1.msra.mxu0 0.0
      %518 = vmatprep.subr.mxu0 0.0
      %519 = vmatpush1.msra.mxu0 0.0
      %520 = vmatprep.subr.mxu0 0.0
      %521 = vmatpush1.msra.mxu0 0.0
      %522 = vmatprep.subr.mxu0 0.0
      %523 = vmatpush1.msra.mxu0 0.0
      %524 = vmatprep.subr.mxu0 0.0
      %525 = vmatpush1.msra.mxu0 0.0
      %526 = vmatprep.subr.mxu0 0.0
      %527 = vmatpush1.msra.mxu0 0.0
      %528 = vmatprep.subr.mxu0 0.0
      %529 = vmatpush1.msra.mxu0 0.0
      %530 = vmatprep.subr.mxu0 0.0
      %531 = vmatpush1.msra.mxu0 0.0
      %532 = vmatprep.subr.mxu0 0.0
      %533 = vmatpush1.msra.mxu0 0.0
      %534 = vmatprep.subr.mxu0 0.0
      %535 = vmatpush1.msra.mxu0 0.0
      %536 = vmatprep.subr.mxu0 0.0
      %537 = vmatpush1.msra.mxu0 0.0
      %538 = vmatprep.subr.mxu0 0.0
      %539 = vmatpush1.msra.mxu0 0.0
      %540 = vmatprep.subr.mxu0 0.0
      %541 = vmatpush1.msra.mxu0 0.0
      %542 = vmatprep.subr.mxu0 0.0
      %543 = vmatpush1.msra.mxu0 0.0
      %544 = vmatprep.subr.mxu0 0.0
      %545 = vmatpush1.msra.mxu0 0.0
      %546 = vmatprep.subr.mxu0 0.0
      %547 = vmatpush1.msra.mxu0 0.0
      %548 = vmatprep.mubr.f32.mxu0 0.0
      %549 = vmatmul.mubr.f32.gmra.mrb[0].mxu0 %v482
      %v550 = vpop.f32.mrb[0].mxu0
      %v551 = vadd.f32 %v473, %v550
      %v552 = vpop.f32.mrb[0].mxu0
      %v553 = vadd.f32 %v477, %v552
      %554 = vdwg.mxu0
      %v555 = vmax.f32 %v551, 0.0
      %v556 = vld [vmem:[%s3] sm:$0xff]
      %v557 = vld [vmem:[%s3 + $0x8] sm:$0xff]
      %v558 = vld [vmem:[%s3 + $0x10] sm:$0xff]
      %v559 = vld [vmem:[%s3 + $0x18] sm:$0xff]
      %v560 = vld [vmem:[%s3 + $0x20] sm:$0xff]
      %v561 = vld [vmem:[%s3 + $0x28] sm:$0xff]
      %v562 = vld [vmem:[%s3 + $0x30] sm:$0xff]
      %v563 = vld [vmem:[%s3 + $0x38] sm:$0xff]
      %v564 = vld [vmem:[%s3 + $0x40] sm:$0xff]
      %v565 = vld [vmem:[%s3 + $0x48] sm:$0xff]
      %v566 = vld [vmem:[%s3 + $0x50] sm:$0xff]
      %v567 = vld [vmem:[%s3 + $0x58] sm:$0xff]
      %v568 = vld [vmem:[%s3 + $0x60] sm:$0xff]
      %v569 = vld [vmem:[%s3 + $0x68] sm:$0xff]
      %v570 = vld [vmem:[%s3 + $0x70] sm:$0xff]
      %v571 = vld [vmem:[%s3 + $0x78] sm:$0xff]
      %v572 = vld [vmem:[%s4] sm:$0x1]
      %v574 = vlaneseq
      %v575 = vshrl.u32 %v574, 7
      %v576 = vsub.s32 0, %v575
      %v577 = vrot.slane %v572, %v576
      %579 = vmatprep.subr.mxu0 0.0
      %580 = vmatpush1.msra.mxu0 %v556
      %581 = vmatprep.subr.mxu0 0.0
      %582 = vmatpush1.msra.mxu0 %v557
      %583 = vmatprep.subr.mxu0 0.0
      %584 = vmatpush1.msra.mxu0 %v558
      %585 = vmatprep.subr.mxu0 0.0
      %586 = vmatpush1.msra.mxu0 %v559
      %587 = vmatprep.subr.mxu0 0.0
      %588 = vmatpush1.msra.mxu0 %v560
      %589 = vmatprep.subr.mxu0 0.0
      %590 = vmatpush1.msra.mxu0 %v561
      %591 = vmatprep.subr.mxu0 0.0
      %592 = vmatpush1.msra.mxu0 %v562
      %593 = vmatprep.subr.mxu0 0.0
      %594 = vmatpush1.msra.mxu0 %v563
      %595 = vmatprep.subr.mxu0 0.0
      %596 = vmatpush1.msra.mxu0 %v564
      %597 = vmatprep.subr.mxu0 0.0
      %598 = vmatpush1.msra.mxu0 %v565
      %599 = vmatprep.subr.mxu0 0.0
      %600 = vmatpush1.msra.mxu0 %v566
      %601 = vmatprep.subr.mxu0 0.0
      %602 = vmatpush1.msra.mxu0 %v567
      %603 = vmatprep.subr.mxu0 0.0
      %604 = vmatpush1.msra.mxu0 %v568
      %605 = vmatprep.subr.mxu0 0.0
      %606 = vmatpush1.msra.mxu0 %v569
      %607 = vmatprep.subr.mxu0 0.0
      %608 = vmatpush1.msra.mxu0 %v570
      %609 = vmatprep.subr.mxu0 0.0
      %610 = vmatpush1.msra.mxu0 %v571
      %611 = vmatprep.subr.mxu0 0.0
      %612 = vmatpush1.msra.mxu0 0.0
      %613 = vmatprep.subr.mxu0 0.0
      %614 = vmatpush1.msra.mxu0 0.0
      %615 = vmatprep.subr.mxu0 0.0
      %616 = vmatpush1.msra.mxu0 0.0
      %617 = vmatprep.subr.mxu0 0.0
      %618 = vmatpush1.msra.mxu0 0.0
      %619 = vmatprep.subr.mxu0 0.0
      %620 = vmatpush1.msra.mxu0 0.0
      %621 = vmatprep.subr.mxu0 0.0
      %622 = vmatpush1.msra.mxu0 0.0
      %623 = vmatprep.subr.mxu0 0.0
      %624 = vmatpush1.msra.mxu0 0.0
      %625 = vmatprep.subr.mxu0 0.0
      %626 = vmatpush1.msra.mxu0 0.0
      %627 = vmatprep.subr.mxu0 0.0
      %628 = vmatpush1.msra.mxu0 0.0
      %629 = vmatprep.subr.mxu0 0.0
      %630 = vmatpush1.msra.mxu0 0.0
      %631 = vmatprep.subr.mxu0 0.0
      %632 = vmatpush1.msra.mxu0 0.0
      %633 = vmatprep.subr.mxu0 0.0
      %634 = vmatpush1.msra.mxu0 0.0
      %635 = vmatprep.subr.mxu0 0.0
      %636 = vmatpush1.msra.mxu0 0.0
      %637 = vmatprep.subr.mxu0 0.0
      %638 = vmatpush1.msra.mxu0 0.0
      %639 = vmatprep.subr.mxu0 0.0
      %640 = vmatpush1.msra.mxu0 0.0
      %641 = vmatprep.subr.mxu0 0.0
      %642 = vmatpush1.msra.mxu0 0.0
      %643 = vmatprep.mubr.f32.mxu0 0.0
      %644 = vmatmul.mubr.f32.gmra.mrb[0].mxu0 %v555
      %v645 = vpop.f32.mrb[0].mxu0
      %v646 = vadd.f32 %v577, %v645
      %v647 = vpop.f32.mrb[0].mxu0
      %648 = vdwg.mxu0
      %vm649 = vcmask 31744
      %v650 = vsel %vm649, %v553, -inf
      %651 = vmax.xlane.f32.xlu0 %v650
      %v652 = vpop.xlane.xlu0 %651
      %vm653 = vcmask 64544
      %v654 = vsel %vm653, %v553, -inf
      %655 = vmax.xlane.f32.xlu0 %v654
      %v656 = vpop.xlane.xlu0 %655
      %vm657 = vcmask 97344
      %v658 = vsel %vm657, %v553, -inf
      %659 = vmax.xlane.f32.xlu0 %v658
      %v660 = vpop.xlane.xlu0 %659
      %vm661 = vcmask 7168
      %v662 = vsel %vm661, %v652, %v656
      %vm663 = vcmask 15360
      %v664 = vsel %vm663, %v662, %v660
      %v665 = vld [vmem:[%s8] sm:$0x7]
      %vm666 = vcmask 23552
      %v668 = vsel %vm666, %v664, 0
      %vm670 = vcmask 1042432
      %v672 = vsel %vm670, %v665, 0
      %674 = vmatprep.subr.mxu0 0.0
      %675 = vmatpush1.msra.mxu0 %v672
      %676 = vmatprep.subr.mxu0 0.0
      %677 = vmatpush1.msra.mxu0 0.0
      %678 = vmatprep.subr.mxu0 0.0
      %679 = vmatpush1.msra.mxu0 0.0
      %680 = vmatprep.subr.mxu0 0.0
      %681 = vmatpush1.msra.mxu0 0.0
      %682 = vmatprep.subr.mxu0 0.0
      %683 = vmatpush1.msra.mxu0 0.0
      %684 = vmatprep.subr.mxu0 0.0
      %685 = vmatpush1.msra.mxu0 0.0
      %686 = vmatprep.subr.mxu0 0.0
      %687 = vmatpush1.msra.mxu0 0.0
      %688 = vmatprep.subr.mxu0 0.0
      %689 = vmatpush1.msra.mxu0 0.0
      %690 = vmatprep.subr.mxu0 0.0
      %691 = vmatpush1.msra.mxu0 0.0
      %692 = vmatprep.subr.mxu0 0.0
      %693 = vmatpush1.msra.mxu0 0.0
      %694 = vmatprep.subr.mxu0 0.0
      %695 = vmatpush1.msra.mxu0 0.0
      %696 = vmatprep.subr.mxu0 0.0
      %697 = vmatpush1.msra.mxu0 0.0
      %698 = vmatprep.subr.mxu0 0.0
      %699 = vmatpush1.msra.mxu0 0.0
      %700 = vmatprep.subr.mxu0 0.0
      %701 = vmatpush1.msra.mxu0 0.0
      %702 = vmatprep.subr.mxu0 0.0
      %703 = vmatpush1.msra.mxu0 0.0
      %704 = vmatprep.subr.mxu0 0.0
      %705 = vmatpush1.msra.mxu0 0.0
      %706 = vmatprep.subr.mxu0 0.0
      %707 = vmatpush1.msra.mxu0 0.0
      %708 = vmatprep.subr.mxu0 0.0
      %709 = vmatpush1.msra.mxu0 0.0
      %710 = vmatprep.subr.mxu0 0.0
      %711 = vmatpush1.msra.mxu0 0.0
      %712 = vmatprep.subr.mxu0 0.0
      %713 = vmatpush1.msra.mxu0 0.0
      %714 = vmatprep.subr.mxu0 0.0
      %715 = vmatpush1.msra.mxu0 0.0
      %716 = vmatprep.subr.mxu0 0.0
      %717 = vmatpush1.msra.mxu0 0.0
      %718 = vmatprep.subr.mxu0 0.0
      %719 = vmatpush1.msra.mxu0 0.0
      %720 = vmatprep.subr.mxu0 0.0
      %721 = vmatpush1.msra.mxu0 0.0
      %722 = vmatprep.subr.mxu0 0.0
      %723 = vmatpush1.msra.mxu0 0.0
      %724 = vmatprep.subr.mxu0 0.0
      %725 = vmatpush1.msra.mxu0 0.0
      %726 = vmatprep.subr.mxu0 0.0
      %727 = vmatpush1.msra.mxu0 0.0
      %728 = vmatprep.subr.mxu0 0.0
      %729 = vmatpush1.msra.mxu0 0.0
      %730 = vmatprep.subr.mxu0 0.0
      %731 = vmatpush1.msra.mxu0 0.0
      %732 = vmatprep.subr.mxu0 0.0
      %733 = vmatpush1.msra.mxu0 0.0
      %734 = vmatprep.subr.mxu0 0.0
      %735 = vmatpush1.msra.mxu0 0.0
      %736 = vmatprep.subr.mxu0 0.0
      %737 = vmatpush1.msra.mxu0 0.0
      %738 = vmatprep.mubr.f32.mxu0 0.0
      %739 = vmatmul.mubr.f32.gmra.mrb[0].mxu0 %v668
      %v740 = vpop.f32.mrb[0].mxu0
      %v741 = vadd.f32 0.0, %v740
      %v742 = vpop.f32.mrb[0].mxu0
      %743 = vdwg.mxu0
      %v744 = vsub.f32 %v553, %v741
      %v745 = vmul.f32 %v744, 1.442695
      %v746 = vpow.pop %v745
      %v747 = vld [vmem:[%s7] sm:$0xff]
      %v748 = vld [vmem:[%s7 + $0x8] sm:$0xf]
      %vm749 = vcmask 97280
      %v751 = vsel %vm749, %v746, 0
      %vm753 = vcmask 1043456
      %v755 = vsel %vm753, %v748, 0
      %757 = vmatprep.subr.mxu0 0.0
      %758 = vmatpush1.msra.mxu0 %v747
      %759 = vmatprep.subr.mxu0 0.0
      %760 = vmatpush1.msra.mxu0 %v755
      %761 = vmatprep.subr.mxu0 0.0
      %762 = vmatpush1.msra.mxu0 0.0
      %763 = vmatprep.subr.mxu0 0.0
      %764 = vmatpush1.msra.mxu0 0.0
      %765 = vmatprep.subr.mxu0 0.0
      %766 = vmatpush1.msra.mxu0 0.0
      %767 = vmatprep.subr.mxu0 0.0
      %768 = vmatpush1.msra.mxu0 0.0
      %769 = vmatprep.subr.mxu0 0.0
      %770 = vmatpush1.msra.mxu0 0.0
      %771 = vmatprep.subr.mxu0 0.0
      %772 = vmatpush1.msra.mxu0 0.0
      %773 = vmatprep.subr.mxu0 0.0
      %774 = vmatpush1.msra.mxu0 0.0
      %775 = vmatprep.subr.mxu0 0.0
      %776 = vmatpush1.msra.mxu0 0.0
      %777 = vmatprep.subr.mxu0 0.0
      %778 = vmatpush1.msra.mxu0 0.0
      %779 = vmatprep.subr.mxu0 0.0
      %780 = vmatpush1.msra.mxu0 0.0
      %781 = vmatprep.subr.mxu0 0.0
      %782 = vmatpush1.msra.mxu0 0.0
      %783 = vmatprep.subr.mxu0 0.0
      %784 = vmatpush1.msra.mxu0 0.0
      %785 = vmatprep.subr.mxu0 0.0
      %786 = vmatpush1.msra.mxu0 0.0
      %787 = vmatprep.subr.mxu0 0.0
      %788 = vmatpush1.msra.mxu0 0.0
      %789 = vmatprep.subr.mxu0 0.0
      %790 = vmatpush1.msra.mxu0 0.0
      %791 = vmatprep.subr.mxu0 0.0
      %792 = vmatpush1.msra.mxu0 0.0
      %793 = vmatprep.subr.mxu0 0.0
      %794 = vmatpush1.msra.mxu0 0.0
      %795 = vmatprep.subr.mxu0 0.0
      %796 = vmatpush1.msra.mxu0 0.0
      %797 = vmatprep.subr.mxu0 0.0
      %798 = vmatpush1.msra.mxu0 0.0
      %799 = vmatprep.subr.mxu0 0.0
      %800 = vmatpush1.msra.mxu0 0.0
      %801 = vmatprep.subr.mxu0 0.0
      %802 = vmatpush1.msra.mxu0 0.0
      %803 = vmatprep.subr.mxu0 0.0
      %804 = vmatpush1.msra.mxu0 0.0
      %805 = vmatprep.subr.mxu0 0.0
      %806 = vmatpush1.msra.mxu0 0.0
      %807 = vmatprep.subr.mxu0 0.0
      %808 = vmatpush1.msra.mxu0 0.0
      %809 = vmatprep.subr.mxu0 0.0
      %810 = vmatpush1.msra.mxu0 0.0
      %811 = vmatprep.subr.mxu0 0.0
      %812 = vmatpush1.msra.mxu0 0.0
      %813 = vmatprep.subr.mxu0 0.0
      %814 = vmatpush1.msra.mxu0 0.0
      %815 = vmatprep.subr.mxu0 0.0
      %816 = vmatpush1.msra.mxu0 0.0
      %817 = vmatprep.subr.mxu0 0.0
      %818 = vmatpush1.msra.mxu0 0.0
      %819 = vmatprep.subr.mxu0 0.0
      %820 = vmatpush1.msra.mxu0 0.0
      %821 = vmatprep.mubr.f32.mxu0 0.0
      %822 = vmatmul.mubr.f32.gmra.mrb[0].mxu0 %v751
      %v823 = vpop.f32.mrb[0].mxu0
      %v824 = vadd.f32 0.0, %v823
      %v825 = vpop.f32.mrb[0].mxu0
      %826 = vdwg.mxu0
      %v827 = vrcp.pop %v824
      %v829 = vsel %vm666, %v827, 0
      %831 = vmatprep.subr.mxu0 0.0
      %832 = vmatpush1.msra.mxu0 %v672
      %833 = vmatprep.subr.mxu0 0.0
      %834 = vmatpush1.msra.mxu0 0.0
      %835 = vmatprep.subr.mxu0 0.0
      %836 = vmatpush1.msra.mxu0 0.0
      %837 = vmatprep.subr.mxu0 0.0
      %838 = vmatpush1.msra.mxu0 0.0
      %839 = vmatprep.subr.mxu0 0.0
      %840 = vmatpush1.msra.mxu0 0.0
      %841 = vmatprep.subr.mxu0 0.0
      %842 = vmatpush1.msra.mxu0 0.0
      %843 = vmatprep.subr.mxu0 0.0
      %844 = vmatpush1.msra.mxu0 0.0
      %845 = vmatprep.subr.mxu0 0.0
      %846 = vmatpush1.msra.mxu0 0.0
      %847 = vmatprep.subr.mxu0 0.0
      %848 = vmatpush1.msra.mxu0 0.0
      %849 = vmatprep.subr.mxu0 0.0
      %850 = vmatpush1.msra.mxu0 0.0
      %851 = vmatprep.subr.mxu0 0.0
      %852 = vmatpush1.msra.mxu0 0.0
      %853 = vmatprep.subr.mxu0 0.0
      %854 = vmatpush1.msra.mxu0 0.0
      %855 = vmatprep.subr.mxu0 0.0
      %856 = vmatpush1.msra.mxu0 0.0
      %857 = vmatprep.subr.mxu0 0.0
      %858 = vmatpush1.msra.mxu0 0.0
      %859 = vmatprep.subr.mxu0 0.0
      %860 = vmatpush1.msra.mxu0 0.0
      %861 = vmatprep.subr.mxu0 0.0
      %862 = vmatpush1.msra.mxu0 0.0
      %863 = vmatprep.subr.mxu0 0.0
      %864 = vmatpush1.msra.mxu0 0.0
      %865 = vmatprep.subr.mxu0 0.0
      %866 = vmatpush1.msra.mxu0 0.0
      %867 = vmatprep.subr.mxu0 0.0
      %868 = vmatpush1.msra.mxu0 0.0
      %869 = vmatprep.subr.mxu0 0.0
      %870 = vmatpush1.msra.mxu0 0.0
      %871 = vmatprep.subr.mxu0 0.0
      %872 = vmatpush1.msra.mxu0 0.0
      %873 = vmatprep.subr.mxu0 0.0
      %874 = vmatpush1.msra.mxu0 0.0
      %875 = vmatprep.subr.mxu0 0.0
      %876 = vmatpush1.msra.mxu0 0.0
      %877 = vmatprep.subr.mxu0 0.0
      %878 = vmatpush1.msra.mxu0 0.0
      %879 = vmatprep.subr.mxu0 0.0
      %880 = vmatpush1.msra.mxu0 0.0
      %881 = vmatprep.subr.mxu0 0.0
      %882 = vmatpush1.msra.mxu0 0.0
      %883 = vmatprep.subr.mxu0 0.0
      %884 = vmatpush1.msra.mxu0 0.0
      %885 = vmatprep.subr.mxu0 0.0
      %886 = vmatpush1.msra.mxu0 0.0
      %887 = vmatprep.subr.mxu0 0.0
      %888 = vmatpush1.msra.mxu0 0.0
      %889 = vmatprep.subr.mxu0 0.0
      %890 = vmatpush1.msra.mxu0 0.0
      %891 = vmatprep.subr.mxu0 0.0
      %892 = vmatpush1.msra.mxu0 0.0
      %893 = vmatprep.subr.mxu0 0.0
      %894 = vmatpush1.msra.mxu0 0.0
      %895 = vmatprep.mubr.f32.mxu0 0.0
      %896 = vmatmul.mubr.f32.gmra.mrb[0].mxu0 %v829
      %v897 = vpop.f32.mrb[0].mxu0
      %v898 = vadd.f32 0.0, %v897
      %v899 = vpop.f32.mrb[0].mxu0
      %900 = vdwg.mxu0
      %v901 = vmul.f32 %v746, %v898
      %v902 = vld [vmem:[%s5] sm:$0xff]
      %v903 = vld [vmem:[%s5 + $0x8] sm:$0xff]
      %v904 = vld [vmem:[%s5 + $0x10] sm:$0xf]
      %v905 = vld [vmem:[%s5 + $0x18] sm:$0xf]
      %v907 = vsel %vm749, %v901, 0
      %v910 = vsel %vm753, %v904, 0
      %v913 = vsel %vm753, %v905, 0
      %915 = vmatprep.subr.mxu0 %v903
      %916 = vmatpush1.msra.mxu0 %v902
      %917 = vmatprep.subr.mxu0 %v913
      %918 = vmatpush1.msra.mxu0 %v910
      %919 = vmatprep.subr.mxu0 0.0
      %920 = vmatpush1.msra.mxu0 0.0
      %921 = vmatprep.subr.mxu0 0.0
      %922 = vmatpush1.msra.mxu0 0.0
      %923 = vmatprep.subr.mxu0 0.0
      %924 = vmatpush1.msra.mxu0 0.0
      %925 = vmatprep.subr.mxu0 0.0
      %926 = vmatpush1.msra.mxu0 0.0
      %927 = vmatprep.subr.mxu0 0.0
      %928 = vmatpush1.msra.mxu0 0.0
      %929 = vmatprep.subr.mxu0 0.0
      %930 = vmatpush1.msra.mxu0 0.0
      %931 = vmatprep.subr.mxu0 0.0
      %932 = vmatpush1.msra.mxu0 0.0
      %933 = vmatprep.subr.mxu0 0.0
      %934 = vmatpush1.msra.mxu0 0.0
      %935 = vmatprep.subr.mxu0 0.0
      %936 = vmatpush1.msra.mxu0 0.0
      %937 = vmatprep.subr.mxu0 0.0
      %938 = vmatpush1.msra.mxu0 0.0
      %939 = vmatprep.subr.mxu0 0.0
      %940 = vmatpush1.msra.mxu0 0.0
      %941 = vmatprep.subr.mxu0 0.0
      %942 = vmatpush1.msra.mxu0 0.0
      %943 = vmatprep.subr.mxu0 0.0
      %944 = vmatpush1.msra.mxu0 0.0
      %945 = vmatprep.subr.mxu0 0.0
      %946 = vmatpush1.msra.mxu0 0.0
      %947 = vmatprep.subr.mxu0 0.0
      %948 = vmatpush1.msra.mxu0 0.0
      %949 = vmatprep.subr.mxu0 0.0
      %950 = vmatpush1.msra.mxu0 0.0
      %951 = vmatprep.subr.mxu0 0.0
      %952 = vmatpush1.msra.mxu0 0.0
      %953 = vmatprep.subr.mxu0 0.0
      %954 = vmatpush1.msra.mxu0 0.0
      %955 = vmatprep.subr.mxu0 0.0
      %956 = vmatpush1.msra.mxu0 0.0
      %957 = vmatprep.subr.mxu0 0.0
      %958 = vmatpush1.msra.mxu0 0.0
      %959 = vmatprep.subr.mxu0 0.0
      %960 = vmatpush1.msra.mxu0 0.0
      %961 = vmatprep.subr.mxu0 0.0
      %962 = vmatpush1.msra.mxu0 0.0
      %963 = vmatprep.subr.mxu0 0.0
      %964 = vmatpush1.msra.mxu0 0.0
      %965 = vmatprep.subr.mxu0 0.0
      %966 = vmatpush1.msra.mxu0 0.0
      %967 = vmatprep.subr.mxu0 0.0
      %968 = vmatpush1.msra.mxu0 0.0
      %969 = vmatprep.subr.mxu0 0.0
      %970 = vmatpush1.msra.mxu0 0.0
      %971 = vmatprep.subr.mxu0 0.0
      %972 = vmatpush1.msra.mxu0 0.0
      %973 = vmatprep.subr.mxu0 0.0
      %974 = vmatpush1.msra.mxu0 0.0
      %975 = vmatprep.subr.mxu0 0.0
      %976 = vmatpush1.msra.mxu0 0.0
      %977 = vmatprep.subr.mxu0 0.0
      %978 = vmatpush1.msra.mxu0 0.0
      %979 = vmatprep.mubr.f32.mxu0 0.0
      %980 = vmatmul.mubr.f32.gmra.mrb[0].mxu0 %v907
      %v981 = vpop.f32.mrb[0].mxu0
      %v982 = vadd.f32 0.0, %v981
      %v983 = vpop.f32.mrb[0].mxu0
      %v984 = vadd.f32 0.0, %v983
      %985 = vdwg.mxu0
      %v986 = vld [vmem:[%s6] sm:$0xff]
      %v987 = vld [vmem:[%s6 + $0x8] sm:$0xff]
      %v988 = vld [vmem:[%s6 + $0x10] sm:$0xff]
      %v989 = vld [vmem:[%s6 + $0x18] sm:$0xff]
      %v990 = vld [vmem:[%s6 + $0x20] sm:$0xff]
      %v991 = vld [vmem:[%s6 + $0x28] sm:$0xff]
      %v992 = vld [vmem:[%s6 + $0x30] sm:$0xff]
      %v993 = vld [vmem:[%s6 + $0x38] sm:$0xff]
      %v994 = vld [vmem:[%s6 + $0x40] sm:$0xff]
      %v995 = vld [vmem:[%s6 + $0x48] sm:$0xff]
      %v996 = vld [vmem:[%s6 + $0x50] sm:$0xff]
      %v997 = vld [vmem:[%s6 + $0x58] sm:$0xff]
      %v998 = vld [vmem:[%s6 + $0x60] sm:$0xff]
      %v999 = vld [vmem:[%s6 + $0x68] sm:$0xff]
      %v1000 = vld [vmem:[%s6 + $0x70] sm:$0xff]
      %v1001 = vld [vmem:[%s6 + $0x78] sm:$0xff]
      %vm1002 = vcmask 523264
      %v1004 = vsel %vm1002, %v646, 0
      %1006 = vmatprep.subr.mxu0 %v987
      %1007 = vmatpush1.msra.mxu0 %v986
      %1008 = vmatprep.subr.mxu0 %v989
      %1009 = vmatpush1.msra.mxu0 %v988
      %1010 = vmatprep.subr.mxu0 %v991
      %1011 = vmatpush1.msra.mxu0 %v990
      %1012 = vmatprep.subr.mxu0 %v993
      %1013 = vmatpush1.msra.mxu0 %v992
      %1014 = vmatprep.subr.mxu0 %v995
      %1015 = vmatpush1.msra.mxu0 %v994
      %1016 = vmatprep.subr.mxu0 %v997
      %1017 = vmatpush1.msra.mxu0 %v996
      %1018 = vmatprep.subr.mxu0 %v999
      %1019 = vmatpush1.msra.mxu0 %v998
      %1020 = vmatprep.subr.mxu0 %v1001
      %1021 = vmatpush1.msra.mxu0 %v1000
      %1022 = vmatprep.subr.mxu0 0.0
      %1023 = vmatpush1.msra.mxu0 0.0
      %1024 = vmatprep.subr.mxu0 0.0
      %1025 = vmatpush1.msra.mxu0 0.0
      %1026 = vmatprep.subr.mxu0 0.0
      %1027 = vmatpush1.msra.mxu0 0.0
      %1028 = vmatprep.subr.mxu0 0.0
      %1029 = vmatpush1.msra.mxu0 0.0
      %1030 = vmatprep.subr.mxu0 0.0
      %1031 = vmatpush1.msra.mxu0 0.0
      %1032 = vmatprep.subr.mxu0 0.0
      %1033 = vmatpush1.msra.mxu0 0.0
      %1034 = vmatprep.subr.mxu0 0.0
      %1035 = vmatpush1.msra.mxu0 0.0
      %1036 = vmatprep.subr.mxu0 0.0
      %1037 = vmatpush1.msra.mxu0 0.0
      %1038 = vmatprep.subr.mxu0 0.0
      %1039 = vmatpush1.msra.mxu0 0.0
      %1040 = vmatprep.subr.mxu0 0.0
      %1041 = vmatpush1.msra.mxu0 0.0
      %1042 = vmatprep.subr.mxu0 0.0
      %1043 = vmatpush1.msra.mxu0 0.0
      %1044 = vmatprep.subr.mxu0 0.0
      %1045 = vmatpush1.msra.mxu0 0.0
      %1046 = vmatprep.subr.mxu0 0.0
      %1047 = vmatpush1.msra.mxu0 0.0
      %1048 = vmatprep.subr.mxu0 0.0
      %1049 = vmatpush1.msra.mxu0 0.0
      %1050 = vmatprep.subr.mxu0 0.0
      %1051 = vmatpush1.msra.mxu0 0.0
      %1052 = vmatprep.subr.mxu0 0.0
      %1053 = vmatpush1.msra.mxu0 0.0
      %1054 = vmatprep.subr.mxu0 0.0
      %1055 = vmatpush1.msra.mxu0 0.0
      %1056 = vmatprep.subr.mxu0 0.0
      %1057 = vmatpush1.msra.mxu0 0.0
      %1058 = vmatprep.subr.mxu0 0.0
      %1059 = vmatpush1.msra.mxu0 0.0
      %1060 = vmatprep.subr.mxu0 0.0
      %1061 = vmatpush1.msra.mxu0 0.0
      %1062 = vmatprep.subr.mxu0 0.0
      %1063 = vmatpush1.msra.mxu0 0.0
      %1064 = vmatprep.subr.mxu0 0.0
      %1065 = vmatpush1.msra.mxu0 0.0
      %1066 = vmatprep.subr.mxu0 0.0
      %1067 = vmatpush1.msra.mxu0 0.0
      %1068 = vmatprep.subr.mxu0 0.0
      %1069 = vmatpush1.msra.mxu0 0.0
      %1070 = vmatprep.mubr.f32.mxu0 0.0
      %1071 = vmatmul.mubr.f32.gmra.mrb[0].mxu0 %v1004
      %v1072 = vpop.f32.mrb[0].mxu0
      %v1073 = vadd.f32 0.0, %v1072
      %v1074 = vpop.f32.mrb[0].mxu0
      %v1075 = vadd.f32 0.0, %v1074
      %1076 = vdwg.mxu0
      %v1077 = vmul.f32 %v982, %v1073
      %v1078 = vmul.f32 %v984, %v1075
      %v1079 = vld [vmem:[%s9] sm:$0xff]
      %v1080 = vld [vmem:[%s9 + $0x8] sm:$0xff]
      %v1081 = vld [vmem:[%s9 + $0x10] sm:$0xff]
      %v1082 = vld [vmem:[%s9 + $0x18] sm:$0xff]
      %v1083 = vld [vmem:[%s9 + $0x20] sm:$0xff]
      %v1084 = vld [vmem:[%s9 + $0x28] sm:$0xff]
      %v1085 = vld [vmem:[%s9 + $0x30] sm:$0xff]
      %v1086 = vld [vmem:[%s9 + $0x38] sm:$0xff]
      %v1087 = vld [vmem:[%s9 + $0x40] sm:$0xff]
      %v1088 = vld [vmem:[%s9 + $0x48] sm:$0xff]
      %v1089 = vld [vmem:[%s9 + $0x50] sm:$0xff]
      %v1090 = vld [vmem:[%s9 + $0x58] sm:$0xff]
      %v1091 = vld [vmem:[%s9 + $0x60] sm:$0xff]
      %v1092 = vld [vmem:[%s9 + $0x68] sm:$0xff]
      %v1093 = vld [vmem:[%s9 + $0x70] sm:$0xff]
      %v1094 = vld [vmem:[%s9 + $0x78] sm:$0xff]
      %v1095 = vld [vmem:[%s9 + $0x80] sm:$0xff]
      %v1096 = vld [vmem:[%s9 + $0x88] sm:$0xff]
      %v1097 = vld [vmem:[%s9 + $0x90] sm:$0xff]
      %v1098 = vld [vmem:[%s9 + $0x98] sm:$0xff]
      %v1099 = vld [vmem:[%s9 + $0xa0] sm:$0xff]
      %v1100 = vld [vmem:[%s9 + $0xa8] sm:$0xff]
      %v1101 = vld [vmem:[%s9 + $0xb0] sm:$0xff]
      %v1102 = vld [vmem:[%s9 + $0xb8] sm:$0xff]
      %v1104 = vsel %vm1002, %v1078, 0
      %1106 = vmatprep.subr.mxu0 0.0
      %1107 = vmatpush1.msra.mxu0 %v1079
      %1108 = vmatprep.subr.mxu0 0.0
      %1109 = vmatpush1.msra.mxu0 %v1080
      %1110 = vmatprep.subr.mxu0 0.0
      %1111 = vmatpush1.msra.mxu0 %v1081
      %1112 = vmatprep.subr.mxu0 0.0
      %1113 = vmatpush1.msra.mxu0 %v1082
      %1114 = vmatprep.subr.mxu0 0.0
      %1115 = vmatpush1.msra.mxu0 %v1083
      %1116 = vmatprep.subr.mxu0 0.0
      %1117 = vmatpush1.msra.mxu0 %v1084
      %1118 = vmatprep.subr.mxu0 0.0
      %1119 = vmatpush1.msra.mxu0 %v1085
      %1120 = vmatprep.subr.mxu0 0.0
      %1121 = vmatpush1.msra.mxu0 %v1086
      %1122 = vmatprep.subr.mxu0 0.0
      %1123 = vmatpush1.msra.mxu0 %v1087
      %1124 = vmatprep.subr.mxu0 0.0
      %1125 = vmatpush1.msra.mxu0 %v1088
      %1126 = vmatprep.subr.mxu0 0.0
      %1127 = vmatpush1.msra.mxu0 %v1089
      %1128 = vmatprep.subr.mxu0 0.0
      %1129 = vmatpush1.msra.mxu0 %v1090
      %1130 = vmatprep.subr.mxu0 0.0
      %1131 = vmatpush1.msra.mxu0 %v1091
      %1132 = vmatprep.subr.mxu0 0.0
      %1133 = vmatpush1.msra.mxu0 %v1092
      %1134 = vmatprep.subr.mxu0 0.0
      %1135 = vmatpush1.msra.mxu0 %v1093
      %1136 = vmatprep.subr.mxu0 0.0
      %1137 = vmatpush1.msra.mxu0 %v1094
      %1138 = vmatprep.subr.mxu0 0.0
      %1139 = vmatpush1.msra.mxu0 %v1095
      %1140 = vmatprep.subr.mxu0 0.0
      %1141 = vmatpush1.msra.mxu0 %v1096
      %1142 = vmatprep.subr.mxu0 0.0
      %1143 = vmatpush1.msra.mxu0 %v1097
      %1144 = vmatprep.subr.mxu0 0.0
      %1145 = vmatpush1.msra.mxu0 %v1098
      %1146 = vmatprep.subr.mxu0 0.0
      %1147 = vmatpush1.msra.mxu0 %v1099
      %1148 = vmatprep.subr.mxu0 0.0
      %1149 = vmatpush1.msra.mxu0 %v1100
      %1150 = vmatprep.subr.mxu0 0.0
      %1151 = vmatpush1.msra.mxu0 %v1101
      %1152 = vmatprep.subr.mxu0 0.0
      %1153 = vmatpush1.msra.mxu0 %v1102
      %1154 = vmatprep.subr.mxu0 0.0
      %1155 = vmatpush1.msra.mxu0 0.0
      %1156 = vmatprep.subr.mxu0 0.0
      %1157 = vmatpush1.msra.mxu0 0.0
      %1158 = vmatprep.subr.mxu0 0.0
      %1159 = vmatpush1.msra.mxu0 0.0
      %1160 = vmatprep.subr.mxu0 0.0
      %1161 = vmatpush1.msra.mxu0 0.0
      %1162 = vmatprep.subr.mxu0 0.0
      %1163 = vmatpush1.msra.mxu0 0.0
      %1164 = vmatprep.subr.mxu0 0.0
      %1165 = vmatpush1.msra.mxu0 0.0
      %1166 = vmatprep.subr.mxu0 0.0
      %1167 = vmatpush1.msra.mxu0 0.0
      %1168 = vmatprep.subr.mxu0 0.0
      %1169 = vmatpush1.msra.mxu0 0.0
      %1170 = vmatprep.mubr.f32.mxu0 %v1104
      %1171 = vmatmul.mubr.f32.gmra.mrb[0].mxu0 %v1077
      %v1172 = vpop.f32.mrb[0].mxu0
      %v1173 = vadd.f32 0.0, %v1172
      %v1174 = vpop.f32.mrb[0].mxu0
      %1175 = vdwg.mxu0
      %v1176 = vld [vmem:[%s10] sm:$0xff]
      %v1177 = vld [vmem:[%s10 + $0x8] sm:$0xff]
      %v1178 = vld [vmem:[%s10 + $0x10] sm:$0xff]
      %v1179 = vld [vmem:[%s10 + $0x18] sm:$0xff]
      %v1180 = vld [vmem:[%s10 + $0x20] sm:$0xff]
      %v1181 = vld [vmem:[%s10 + $0x28] sm:$0xff]
      %v1182 = vld [vmem:[%s11] sm:$0x1]
      %v1184 = vlaneseq
      %v1185 = vshrl.u32 %v1184, 7
      %v1186 = vsub.s32 0, %v1185
      %v1187 = vrot.slane %v1182, %v1186
      %vm1189 = vcmask 392192
      %v1191 = vsel %vm1189, %v1173, 0
      %1193 = vmatprep.subr.mxu0 0.0
      %1194 = vmatpush1.msra.mxu0 %v1176
      %1195 = vmatprep.subr.mxu0 0.0
      %1196 = vmatpush1.msra.mxu0 %v1177
      %1197 = vmatprep.subr.mxu0 0.0
      %1198 = vmatpush1.msra.mxu0 %v1178
      %1199 = vmatprep.subr.mxu0 0.0
      %1200 = vmatpush1.msra.mxu0 %v1179
      %1201 = vmatprep.subr.mxu0 0.0
      %1202 = vmatpush1.msra.mxu0 %v1180
      %1203 = vmatprep.subr.mxu0 0.0
      %1204 = vmatpush1.msra.mxu0 %v1181
      %1205 = vmatprep.subr.mxu0 0.0
      %1206 = vmatpush1.msra.mxu0 0.0
      %1207 = vmatprep.subr.mxu0 0.0
      %1208 = vmatpush1.msra.mxu0 0.0
      %1209 = vmatprep.subr.mxu0 0.0
      %1210 = vmatpush1.msra.mxu0 0.0
      %1211 = vmatprep.subr.mxu0 0.0
      %1212 = vmatpush1.msra.mxu0 0.0
      %1213 = vmatprep.subr.mxu0 0.0
      %1214 = vmatpush1.msra.mxu0 0.0
      %1215 = vmatprep.subr.mxu0 0.0
      %1216 = vmatpush1.msra.mxu0 0.0
      %1217 = vmatprep.subr.mxu0 0.0
      %1218 = vmatpush1.msra.mxu0 0.0
      %1219 = vmatprep.subr.mxu0 0.0
      %1220 = vmatpush1.msra.mxu0 0.0
      %1221 = vmatprep.subr.mxu0 0.0
      %1222 = vmatpush1.msra.mxu0 0.0
      %1223 = vmatprep.subr.mxu0 0.0
      %1224 = vmatpush1.msra.mxu0 0.0
      %1225 = vmatprep.subr.mxu0 0.0
      %1226 = vmatpush1.msra.mxu0 0.0
      %1227 = vmatprep.subr.mxu0 0.0
      %1228 = vmatpush1.msra.mxu0 0.0
      %1229 = vmatprep.subr.mxu0 0.0
      %1230 = vmatpush1.msra.mxu0 0.0
      %1231 = vmatprep.subr.mxu0 0.0
      %1232 = vmatpush1.msra.mxu0 0.0
      %1233 = vmatprep.subr.mxu0 0.0
      %1234 = vmatpush1.msra.mxu0 0.0
      %1235 = vmatprep.subr.mxu0 0.0
      %1236 = vmatpush1.msra.mxu0 0.0
      %1237 = vmatprep.subr.mxu0 0.0
      %1238 = vmatpush1.msra.mxu0 0.0
      %1239 = vmatprep.subr.mxu0 0.0
      %1240 = vmatpush1.msra.mxu0 0.0
      %1241 = vmatprep.subr.mxu0 0.0
      %1242 = vmatpush1.msra.mxu0 0.0
      %1243 = vmatprep.subr.mxu0 0.0
      %1244 = vmatpush1.msra.mxu0 0.0
      %1245 = vmatprep.subr.mxu0 0.0
      %1246 = vmatpush1.msra.mxu0 0.0
      %1247 = vmatprep.subr.mxu0 0.0
      %1248 = vmatpush1.msra.mxu0 0.0
      %1249 = vmatprep.subr.mxu0 0.0
      %1250 = vmatpush1.msra.mxu0 0.0
      %1251 = vmatprep.subr.mxu0 0.0
      %1252 = vmatpush1.msra.mxu0 0.0
      %1253 = vmatprep.subr.mxu0 0.0
      %1254 = vmatpush1.msra.mxu0 0.0
      %1255 = vmatprep.subr.mxu0 0.0
      %1256 = vmatpush1.msra.mxu0 0.0
      %1257 = vmatprep.mubr.f32.mxu0 0.0
      %1258 = vmatmul.mubr.f32.gmra.mrb[0].mxu0 %v1191
      %v1259 = vpop.f32.mrb[0].mxu0
      %v1260 = vadd.f32 %v1187, %v1259
      %v1261 = vpop.f32.mrb[0].mxu0
      %1262 = vdwg.mxu0
      %v1263 = vmax.f32 %v1260, 0.0
      %v1264 = vld [vmem:[%s12] sm:$0xff]
      %v1265 = vld [vmem:[%s12 + $0x8] sm:$0xff]
      %v1266 = vld [vmem:[%s12 + $0x10] sm:$0xff]
      %v1267 = vld [vmem:[%s12 + $0x18] sm:$0xff]
      %v1268 = vld [vmem:[%s12 + $0x20] sm:$0xff]
      %v1269 = vld [vmem:[%s12 + $0x28] sm:$0xff]
      %v1270 = vld [vmem:[%s13] sm:$0x1]
      %v1272 = vlaneseq
      %v1273 = vshrl.u32 %v1272, 7
      %v1274 = vsub.s32 0, %v1273
      %v1275 = vrot.slane %v1270, %v1274
      %v1278 = vsel %vm1189, %v1263, 0
      %1280 = vmatprep.subr.mxu0 0.0
      %1281 = vmatpush1.msra.mxu0 %v1264
      %1282 = vmatprep.subr.mxu0 0.0
      %1283 = vmatpush1.msra.mxu0 %v1265
      %1284 = vmatprep.subr.mxu0 0.0
      %1285 = vmatpush1.msra.mxu0 %v1266
      %1286 = vmatprep.subr.mxu0 0.0
      %1287 = vmatpush1.msra.mxu0 %v1267
      %1288 = vmatprep.subr.mxu0 0.0
      %1289 = vmatpush1.msra.mxu0 %v1268
      %1290 = vmatprep.subr.mxu0 0.0
      %1291 = vmatpush1.msra.mxu0 %v1269
      %1292 = vmatprep.subr.mxu0 0.0
      %1293 = vmatpush1.msra.mxu0 0.0
      %1294 = vmatprep.subr.mxu0 0.0
      %1295 = vmatpush1.msra.mxu0 0.0
      %1296 = vmatprep.subr.mxu0 0.0
      %1297 = vmatpush1.msra.mxu0 0.0
      %1298 = vmatprep.subr.mxu0 0.0
      %1299 = vmatpush1.msra.mxu0 0.0
      %1300 = vmatprep.subr.mxu0 0.0
      %1301 = vmatpush1.msra.mxu0 0.0
      %1302 = vmatprep.subr.mxu0 0.0
      %1303 = vmatpush1.msra.mxu0 0.0
      %1304 = vmatprep.subr.mxu0 0.0
      %1305 = vmatpush1.msra.mxu0 0.0
      %1306 = vmatprep.subr.mxu0 0.0
      %1307 = vmatpush1.msra.mxu0 0.0
      %1308 = vmatprep.subr.mxu0 0.0
      %1309 = vmatpush1.msra.mxu0 0.0
      %1310 = vmatprep.subr.mxu0 0.0
      %1311 = vmatpush1.msra.mxu0 0.0
      %1312 = vmatprep.subr.mxu0 0.0
      %1313 = vmatpush1.msra.mxu0 0.0
      %1314 = vmatprep.subr.mxu0 0.0
      %1315 = vmatpush1.msra.mxu0 0.0
      %1316 = vmatprep.subr.mxu0 0.0
      %1317 = vmatpush1.msra.mxu0 0.0
      %1318 = vmatprep.subr.mxu0 0.0
      %1319 = vmatpush1.msra.mxu0 0.0
      %1320 = vmatprep.subr.mxu0 0.0
      %1321 = vmatpush1.msra.mxu0 0.0
      %1322 = vmatprep.subr.mxu0 0.0
      %1323 = vmatpush1.msra.mxu0 0.0
      %1324 = vmatprep.subr.mxu0 0.0
      %1325 = vmatpush1.msra.mxu0 0.0
      %1326 = vmatprep.subr.mxu0 0.0
      %1327 = vmatpush1.msra.mxu0 0.0
      %1328 = vmatprep.subr.mxu0 0.0
      %1329 = vmatpush1.msra.mxu0 0.0
      %1330 = vmatprep.subr.mxu0 0.0
      %1331 = vmatpush1.msra.mxu0 0.0
      %1332 = vmatprep.subr.mxu0 0.0
      %1333 = vmatpush1.msra.mxu0 0.0
      %1334 = vmatprep.subr.mxu0 0.0
      %1335 = vmatpush1.msra.mxu0 0.0
      %1336 = vmatprep.subr.mxu0 0.0
      %1337 = vmatpush1.msra.mxu0 0.0
      %1338 = vmatprep.subr.mxu0 0.0
      %1339 = vmatpush1.msra.mxu0 0.0
      %1340 = vmatprep.subr.mxu0 0.0
      %1341 = vmatpush1.msra.mxu0 0.0
      %1342 = vmatprep.subr.mxu0 0.0
      %1343 = vmatpush1.msra.mxu0 0.0
      %1344 = vmatprep.mubr.f32.mxu0 0.0
      %1345 = vmatmul.mubr.f32.gmra.mrb[0].mxu0 %v1278
      %v1346 = vpop.f32.mrb[0].mxu0
      %v1347 = vadd.f32 %v1275, %v1346
      %v1348 = vpop.f32.mrb[0].mxu0
      %1349 = vdwg.mxu0
      %v1350 = vxor.u32 %v1347, 2147483648
      %v1351 = vmul.f32 %v1350, 1.442695
      %v1352 = vpow.pop %v1351
      %v1353 = vadd.f32 %v1352, 1.0
      %v1354 = vrcp.pop %v1353
      %v1355 = vmul.f32 1.0, %v1354
      %1356 = vst.msk [vmem:[%s462] sm:$0xff] %vm666, %v1355
      %p1357 = scmp.lt.s32.totalorder %s25, 1
      %s1358 = scalar_select %p1357, %s25, 1
      %s1359 = smul.addr %s1358, 8
      %s1360 = scalar_lea.vmem %s14, %s1359
      // Predicated region
      $region77: #{tpu_custom_call.1} parent=75 // pred_check
        %p1361 = pneg %p342
      $region78: #{tpu_custom_call.1} parent=75 // pred_check_branch
        %1363 = sbr.rel (%p1361) target = $region80
      $region79: #{tpu_custom_call.1} parent=75 // pred_region
        _
      $region80: #{tpu_custom_call.1} parent=75 // pred_fallthru
        _
    $region76: #{tpu_custom_call.1} parent=5 // pred_fallthru
      _
    %p1364 = scmp.le.s32.totalorder 2, %s20
    // Predicated region
    $region81: #{tpu_custom_call.1} parent=5 // pred_check
      %p1365 = pneg %p1364
    $region82: #{tpu_custom_call.1} parent=5 // pred_check_branch
      %1367 = sbr.rel (%p1365) target = $region84
    $region83: #{tpu_custom_call.1} parent=5 // pred_region
      %s1368 = ssub.s32 %s20, 2
      // Predicated region
      $region85: #{tpu_custom_call.1} parent=83 // pred_check
        %p1369 = pneg %p348
      $region86: #{tpu_custom_call.1} parent=83 // pred_check_branch
        %1371 = sbr.rel (%p1369) target = $region88
      $region87: #{tpu_custom_call.1} parent=83 // pred_region
        %p1372 = scmp.lt.s32.totalorder %s26, 1
        %s1373 = scalar_select %p1372, %s26, 1
        %s1374 = smul.addr %s1373, 8
        %s1375 = scalar_lea.vmem %s14, %s1374
      $region88: #{tpu_custom_call.1} parent=83 // pred_fallthru
        _
    $region84: #{tpu_custom_call.1} parent=5 // pred_fallthru
      _
  $region6: #{tpu_custom_call.1} parent=0 // loop_footer
    %s24 = sadd.s32 1, %s20
  $region7: #{tpu_custom_call.1} parent=0 // loop_footer_branch
    %19 = sbr.rel target = $region3
  $region8: #{tpu_custom_call.1} parent=0 // loop_exit
    _

</llo_original>
